<compile_context>
chip_gen: v7x
topology: tpu7x:2x2x1
jax: 0.10.0
libtpu: 0.0.40
codegen_flags: <defaults>
</compile_context>

<pallas_src>
import jax
import jax.numpy as jnp
from jax.experimental import pallas as pl
from jax.experimental.pallas import tpu as pltpu


def _round_up(x, m):
    return ((x + m - 1) // m) * m


def convexnet_kernel(x_ref, wf_ref, ball_ref, w2_ref, w3_ref, w4_ref, w5r_ref, o_ref):
    Hp = w2_ref.shape[0]                 # padded hidden size (multiple of 128)

    x_bf = x_ref[...].astype(jnp.bfloat16)

    # One fused MXU push for fc1 + all skip connections, plus ONE fused f32
    # bias add.  Column layout: [fc1 | skip1 | skip2 | skip3 | skip4(+pad)],
    # each segment Hp wide (skip4 segment is 128 wide), so every slice below
    # is a 128-lane-aligned zero-cost view.
    xs = (jnp.dot(x_bf, wf_ref[...], preferred_element_type=jnp.float32)
          + ball_ref[...])

    # fc1 -> relu  (bias already inside xs)
    h = jnp.maximum(xs[:, 0:Hp], 0.0)

    # fc2 + skip1 -> relu   (skip + both biases already inside xs segment 1)
    h = jnp.maximum(
        jnp.dot(h.astype(jnp.bfloat16), w2_ref[...],
                preferred_element_type=jnp.float32) + xs[:, Hp:2 * Hp], 0.0)

    # fc3 + skip2 -> relu
    h = jnp.maximum(
        jnp.dot(h.astype(jnp.bfloat16), w3_ref[...],
                preferred_element_type=jnp.float32) + xs[:, 2 * Hp:3 * Hp], 0.0)

    # fc4 + skip3 -> relu
    h = jnp.maximum(
        jnp.dot(h.astype(jnp.bfloat16), w4_ref[...],
                preferred_element_type=jnp.float32) + xs[:, 3 * Hp:4 * Hp], 0.0)

    # fc5 + skip4 -> sigmoid.  N=1: VPU mul + XLU lane reduction (no MXU);
    # skip4's column + all biases came from the fused x-side matmul.
    z = (jnp.sum(h * w5r_ref[...], axis=-1, keepdims=True)
         + xs[:, 4 * Hp:4 * Hp + 1])

    # Exact sigmoid: exp on the EUP, exact f32 divide (exp(-z)->inf gives 0,
    # never NaN).  The approx reciprocal was the source of the tolerance miss.
    o_ref[...] = 1.0 / (1.0 + jnp.exp(-z))

    # TODO(synk): nn.Dropout(p=0.5) is declared in __init__ but never applied
    # in forward(); omitted (identity in eval mode anyway).


def pack_params(params):
    """Pad hidden dims to a multiple of 128, fuse fc1 + skips + all biases."""
    H = params["fc1"]["w"].shape[1]
    Hp = _round_up(H, 128)

    def pad_cols(a, n):
        return jnp.pad(a, ((0, 0), (0, n - a.shape[1])))

    def pad_rows(a, n):
        return jnp.pad(a, ((0, n - a.shape[0]), (0, 0)))

    # Fused x-side weight [in_units, 4*Hp + 128]: fc1 columns FIRST (critical
    # path pops first from the MRF), then the three hidden skips, then skip4.
    wf = jnp.concatenate(
        [pad_cols(params["fc1"]["w"], Hp),
         pad_cols(params["skip1"]["w"], Hp),
         pad_cols(params["skip2"]["w"], Hp),
         pad_cols(params["skip3"]["w"], Hp),
         pad_cols(params["skip4"]["w"], 128)], axis=1).astype(jnp.bfloat16)

    # Fused f32 bias row, same column layout.  Skip biases are folded into the
    # following layer's main bias (b2+=s1b, b3+=s2b, b4+=s3b, b5+=s4b).
    ball = jnp.concatenate(
        [pad_cols(params["fc1"]["b"], Hp),
         pad_cols(params["fc2"]["b"] + params["skip1"]["b"], Hp),
         pad_cols(params["fc3"]["b"] + params["skip2"]["b"], Hp),
         pad_cols(params["fc4"]["b"] + params["skip3"]["b"], Hp),
         pad_cols(params["fc5"]["b"] + params["skip4"]["b"], 128)],
        axis=1).astype(jnp.float32)

    # Hidden-layer weights padded to [Hp, Hp] with zeros: padded activation
    # lanes stay exactly zero through every layer, so padding is semantics-free.
    def pad_sq(w):
        return pad_rows(pad_cols(w, Hp), Hp)

    return {
        "wf": wf,
        "ball": ball,
        "w2": pad_sq(params["fc2"]["w"]).astype(jnp.bfloat16),
        "w3": pad_sq(params["fc3"]["w"]).astype(jnp.bfloat16),
        "w4": pad_sq(params["fc4"]["w"]).astype(jnp.bfloat16),
        # fc5 weight as an f32 row [1, Hp] for the lane reduction.
        "w5r": pad_rows(params["fc5"]["w"], Hp).reshape(1, Hp).astype(jnp.float32),
    }


def _choose_batch_tile(B, in_units, Hp, n_fused_cols, requested, x_itemsize):
    """Pick a batch tile from a live-VMEM budget that also fits v7x (64 MiB)."""
    if B <= 8:
        return max(B, 1)
    per_row = (
        n_fused_cols * 4            # fused xs slab (f32), live across all layers
        + Hp * 4 + Hp * 2           # h (f32) + its bf16 copy for the next matmul
        + 2 * in_units * x_itemsize  # double-buffered x tile
        + 2 * 128 * 4               # double-buffered out tile (1 col -> one lane tile)
    )
    budget = 32 * 1024 * 1024       # headroom below the 48 MiB vmem limit / v7x VMEM
    tb = max(8, (budget // per_row) // 8 * 8)
    tb = min(tb, max(8, (requested // 8) * 8))
    # v7x megacore: keep >=2 grid steps so both TensorCores get work.
    tb = min(tb, _round_up((B + 1) // 2, 8))
    tb = min(tb, max(8, (B // 8) * 8))
    return tb


def convexnet_forward(x, params, *, block_batch=4096, single_buffer_weights=True):
    """ConvexNet forward pass as one Pallas call, tiled over the batch.

    x may be f32 or bf16 ([B, input_units]); bf16 halves the HBM read on v5e
    (the in-kernel cast becomes a no-op).
    """
    B, in_units = x.shape
    pk = pack_params(params)
    Hp = pk["w2"].shape[0]
    n_fused_cols = pk["wf"].shape[1]

    tb = _choose_batch_tile(B, in_units, Hp, n_fused_cols, block_batch,
                            jnp.dtype(x.dtype).itemsize)
    grid = (pl.cdiv(B, tb),)

    operands = (x, pk["wf"], pk["ball"], pk["w2"], pk["w3"], pk["w4"], pk["w5r"])

    def run(single_buffer):
        w_kwargs = dict(pipeline_mode=pl.Buffered(1)) if single_buffer else {}
        in_specs = [pl.BlockSpec((tb, in_units), lambda i: (i, 0))] + [
            # Constant index map -> weights stay VMEM-resident (no re-DMA);
            # Buffered(1) avoids allocating a useless second buffer (v7x VMEM).
            pl.BlockSpec(op.shape, lambda i: (0, 0), **w_kwargs)
            for op in operands[1:]
        ]
        return pl.pallas_call(
            convexnet_kernel,
            out_shape=jax.ShapeDtypeStruct((B, 1), jnp.float32),
            grid=grid,
            in_specs=in_specs,
            out_specs=pl.BlockSpec((tb, 1), lambda i: (i, 0)),
            compiler_params=pltpu.CompilerParams(
                dimension_semantics=("parallel",),        # shards batch over v7x's 2 TCs
                vmem_limit_bytes=48 * 1024 * 1024),       # above 16/32 MiB defaults, below v7x's 64 MiB
        )(*operands)

    if single_buffer_weights:
        try:
            return run(True)
        except Exception:
            # Fallback for JAX builds without Buffered(1) support on this path.
            pass
    return run(False)


def init_linear(key, in_features, out_features):
    """Init mimicking nn.Linear's uniform(-1/sqrt(in), 1/sqrt(in)).

    Weight stored transposed: [in_features, out_features]; bias [1, out].
    """
    kw, kb = jax.random.split(key)
    bound = 1.0 / jnp.sqrt(jnp.float32(in_features))
    w = jax.random.uniform(kw, (in_features, out_features), jnp.float32, -bound, bound)
    b = jax.random.uniform(kb, (1, out_features), jnp.float32, -bound, bound)
    return {"w": w, "b": b}


def init_params(key, input_units, hidden_units):
    keys = jax.random.split(key, 9)
    return {
        "fc1": init_linear(keys[0], input_units, hidden_units),
        "fc2": init_linear(keys[1], hidden_units, hidden_units),
        "fc3": init_linear(keys[2], hidden_units, hidden_units),
        "fc4": init_linear(keys[3], hidden_units, hidden_units),
        "fc5": init_linear(keys[4], hidden_units, 1),
        "skip1": init_linear(keys[5], input_units, hidden_units),
        "skip2": init_linear(keys[6], input_units, hidden_units),
        "skip3": init_linear(keys[7], input_units, hidden_units),
        "skip4": init_linear(keys[8], input_units, 1),
    }


def reference_forward_f32(x, params):
    """Pure-JAX f32 reference matching the PyTorch forward semantics."""
    def lin(name, v):
        return v @ params[name]["w"] + params[name]["b"]
    p = x
    h = jax.nn.relu(lin("fc1", x))
    h = jax.nn.relu(lin("fc2", h) + lin("skip1", p))
    h = jax.nn.relu(lin("fc3", h) + lin("skip2", p))
    h = jax.nn.relu(lin("fc4", h) + lin("skip3", p))
    z = lin("fc5", h) + lin("skip4", p)
    return jax.nn.sigmoid(z)


def reference_forward_mixed(x, params):
    """Reference mirroring the kernel's mixed precision (bf16 matmul operands,
    f32 accumulation / biases, f32 lane reduction for fc5)."""
    def bdot(a, w):
        return jnp.dot(a.astype(jnp.bfloat16), w.astype(jnp.bfloat16),
                       preferred_element_type=jnp.float32)
    p = x
    h = jax.nn.relu(bdot(x, params["fc1"]["w"]) + params["fc1"]["b"])
    h = jax.nn.relu(bdot(h, params["fc2"]["w"]) + bdot(p, params["skip1"]["w"])
                    + params["fc2"]["b"] + params["skip1"]["b"])
    h = jax.nn.relu(bdot(h, params["fc3"]["w"]) + bdot(p, params["skip2"]["w"])
                    + params["fc3"]["b"] + params["skip2"]["b"])
    h = jax.nn.relu(bdot(h, params["fc4"]["w"]) + bdot(p, params["skip3"]["w"])
                    + params["fc4"]["b"] + params["skip3"]["b"])
    z = (jnp.sum(h * params["fc5"]["w"].reshape(1, -1), axis=-1, keepdims=True)
         + params["fc5"]["b"]
         + bdot(p, params["skip4"]["w"]) + params["skip4"]["b"])
    return jax.nn.sigmoid(z)


if __name__ == "__main__":
    key = jax.random.PRNGKey(0)
    k_params, k_x = jax.random.split(key)

    batch = 8
    input_units = 16
    hidden_units = 32

    params = init_params(k_params, input_units, hidden_units)
    x = jax.random.normal(k_x, (batch, input_units), dtype=jnp.float32)

    out = jax.block_until_ready(convexnet_forward(x, params))
    assert out.shape == (batch, 1), out.shape

    # Tight check against a reference with matching mixed precision.
    ref_mixed = reference_forward_mixed(x, params)
    assert jnp.allclose(out, ref_mixed, atol=2e-3, rtol=0), (out, ref_mixed)

    # Looser check against the exact f32 PyTorch-semantics reference
    # (differences come only from bf16 matmul-operand rounding).
    ref_f32 = reference_forward_f32(x, params)
    assert jnp.allclose(out, ref_f32, atol=3e-2, rtol=0), (out, ref_f32)

    print("KERNEL_OK")
</pallas_src>

<mosaic_0001>
module attributes {stable_mosaic.version = 11 : i64} {
  func.func @convexnet_kernel(%arg0: i32, %arg1: memref<8x16xf32, #tpu.memory_space<vmem>>, %arg2: memref<16x640xbf16, #tpu.memory_space<vmem>>, %arg3: memref<1x640xf32, #tpu.memory_space<vmem>>, %arg4: memref<128x128xbf16, #tpu.memory_space<vmem>>, %arg5: memref<128x128xbf16, #tpu.memory_space<vmem>>, %arg6: memref<128x128xbf16, #tpu.memory_space<vmem>>, %arg7: memref<1x128xf32, #tpu.memory_space<vmem>>, %arg8: memref<8x1xf32, #tpu.memory_space<vmem>>) attributes {dimension_semantics = [#tpu.dimension_semantics<parallel>], iteration_bounds = array<i64: 1>, scalar_prefetch = 0 : i64, scratch_operands = 0 : i64, tpu.core_type = #tpu.core_type<tc>, window_params = [{transform_indices = @transform_0, window_bounds = array<i64: 8, 16>}, {pipeline_mode = #tpu.pipeline_mode<synchronous>, transform_indices = @transform_1, window_bounds = array<i64: 16, 640>}, {pipeline_mode = #tpu.pipeline_mode<synchronous>, transform_indices = @transform_2, window_bounds = array<i64: 1, 640>}, {pipeline_mode = #tpu.pipeline_mode<synchronous>, transform_indices = @transform_3, window_bounds = array<i64: 128, 128>}, {pipeline_mode = #tpu.pipeline_mode<synchronous>, transform_indices = @transform_4, window_bounds = array<i64: 128, 128>}, {pipeline_mode = #tpu.pipeline_mode<synchronous>, transform_indices = @transform_5, window_bounds = array<i64: 128, 128>}, {pipeline_mode = #tpu.pipeline_mode<synchronous>, transform_indices = @transform_6, window_bounds = array<i64: 1, 128>}, {transform_indices = @transform_7, window_bounds = array<i64: 8, 1>}]} {
    %c0 = arith.constant 0 : index
    %c0_0 = arith.constant 0 : index
    %0 = vector.load %arg1[%c0, %c0_0] : memref<8x16xf32, #tpu.memory_space<vmem>>, vector<8x16xf32>
    %1 = arith.truncf %0 : vector<8x16xf32> to vector<8x16xbf16>
    %c0_1 = arith.constant 0 : index
    %c0_2 = arith.constant 0 : index
    %2 = vector.load %arg2[%c0_1, %c0_2] : memref<16x640xbf16, #tpu.memory_space<vmem>>, vector<16x640xbf16>
    %cst = arith.constant dense<0.000000e+00> : vector<8x640xf32>
    %3 = tpu.matmul %1, %2, %cst {dimension_numbers = #tpu.dot_dimension_numbers<[1], [0], [0], [1], [0, 0, 1, 1], [], []>} : vector<8x16xbf16>, vector<16x640xbf16>, vector<8x640xf32> -> vector<8x640xf32>
    %c0_3 = arith.constant 0 : index
    %c0_4 = arith.constant 0 : index
    %4 = vector.load %arg3[%c0_3, %c0_4] : memref<1x640xf32, #tpu.memory_space<vmem>>, vector<1x640xf32>
    %5 = vector.broadcast %4 : vector<1x640xf32> to vector<8x640xf32>
    %6 = arith.addf %3, %5 : vector<8x640xf32>
    %7 = vector.extract_strided_slice %6 {offsets = [0, 0], sizes = [8, 128], strides = [1, 1]} : vector<8x640xf32> to vector<8x128xf32>
    %cst_5 = arith.constant 0.000000e+00 : f32
    %8 = vector.broadcast %cst_5 : f32 to vector<8x128xf32>
    %9 = arith.maximumf %7, %8 : vector<8x128xf32>
    %10 = arith.truncf %9 : vector<8x128xf32> to vector<8x128xbf16>
    %c0_6 = arith.constant 0 : index
    %c0_7 = arith.constant 0 : index
    %11 = vector.load %arg4[%c0_6, %c0_7] : memref<128x128xbf16, #tpu.memory_space<vmem>>, vector<128x128xbf16>
    %cst_8 = arith.constant dense<0.000000e+00> : vector<8x128xf32>
    %12 = tpu.matmul %10, %11, %cst_8 {dimension_numbers = #tpu.dot_dimension_numbers<[1], [0], [0], [1], [0, 0, 1, 1], [], []>} : vector<8x128xbf16>, vector<128x128xbf16>, vector<8x128xf32> -> vector<8x128xf32>
    %13 = vector.extract_strided_slice %6 {offsets = [0, 128], sizes = [8, 128], strides = [1, 1]} : vector<8x640xf32> to vector<8x128xf32>
    %14 = arith.addf %12, %13 : vector<8x128xf32>
    %cst_9 = arith.constant 0.000000e+00 : f32
    %15 = vector.broadcast %cst_9 : f32 to vector<8x128xf32>
    %16 = arith.maximumf %14, %15 : vector<8x128xf32>
    %17 = arith.truncf %16 : vector<8x128xf32> to vector<8x128xbf16>
    %c0_10 = arith.constant 0 : index
    %c0_11 = arith.constant 0 : index
    %18 = vector.load %arg5[%c0_10, %c0_11] : memref<128x128xbf16, #tpu.memory_space<vmem>>, vector<128x128xbf16>
    %cst_12 = arith.constant dense<0.000000e+00> : vector<8x128xf32>
    %19 = tpu.matmul %17, %18, %cst_12 {dimension_numbers = #tpu.dot_dimension_numbers<[1], [0], [0], [1], [0, 0, 1, 1], [], []>} : vector<8x128xbf16>, vector<128x128xbf16>, vector<8x128xf32> -> vector<8x128xf32>
    %20 = vector.extract_strided_slice %6 {offsets = [0, 256], sizes = [8, 128], strides = [1, 1]} : vector<8x640xf32> to vector<8x128xf32>
    %21 = arith.addf %19, %20 : vector<8x128xf32>
    %cst_13 = arith.constant 0.000000e+00 : f32
    %22 = vector.broadcast %cst_13 : f32 to vector<8x128xf32>
    %23 = arith.maximumf %21, %22 : vector<8x128xf32>
    %24 = arith.truncf %23 : vector<8x128xf32> to vector<8x128xbf16>
    %c0_14 = arith.constant 0 : index
    %c0_15 = arith.constant 0 : index
    %25 = vector.load %arg6[%c0_14, %c0_15] : memref<128x128xbf16, #tpu.memory_space<vmem>>, vector<128x128xbf16>
    %cst_16 = arith.constant dense<0.000000e+00> : vector<8x128xf32>
    %26 = tpu.matmul %24, %25, %cst_16 {dimension_numbers = #tpu.dot_dimension_numbers<[1], [0], [0], [1], [0, 0, 1, 1], [], []>} : vector<8x128xbf16>, vector<128x128xbf16>, vector<8x128xf32> -> vector<8x128xf32>
    %27 = vector.extract_strided_slice %6 {offsets = [0, 384], sizes = [8, 128], strides = [1, 1]} : vector<8x640xf32> to vector<8x128xf32>
    %28 = arith.addf %26, %27 : vector<8x128xf32>
    %cst_17 = arith.constant 0.000000e+00 : f32
    %29 = vector.broadcast %cst_17 : f32 to vector<8x128xf32>
    %30 = arith.maximumf %28, %29 : vector<8x128xf32>
    %c0_18 = arith.constant 0 : index
    %c0_19 = arith.constant 0 : index
    %31 = vector.load %arg7[%c0_18, %c0_19] : memref<1x128xf32, #tpu.memory_space<vmem>>, vector<1x128xf32>
    %32 = vector.broadcast %31 : vector<1x128xf32> to vector<8x128xf32>
    %33 = arith.mulf %30, %32 : vector<8x128xf32>
    %cst_20 = arith.constant dense<0.000000e+00> : vector<8xf32>
    %34 = vector.multi_reduction <add>, %33, %cst_20 [1] : vector<8x128xf32> to vector<8xf32>
    %35 = vector.shape_cast %34 : vector<8xf32> to vector<8x1xf32>
    %36 = vector.extract_strided_slice %6 {offsets = [0, 512], sizes = [8, 1], strides = [1, 1]} : vector<8x640xf32> to vector<8x1xf32>
    %37 = arith.addf %35, %36 : vector<8x1xf32>
    %cst_21 = arith.constant 0.000000e+00 : f32
    %38 = vector.broadcast %cst_21 : f32 to vector<8x1xf32>
    %39 = arith.subf %38, %37 : vector<8x1xf32>
    %40 = math.exp %39 : vector<8x1xf32>
    %cst_22 = arith.constant 1.000000e+00 : f32
    %41 = vector.broadcast %cst_22 : f32 to vector<8x1xf32>
    %42 = arith.addf %41, %40 : vector<8x1xf32>
    %cst_23 = arith.constant 1.000000e+00 : f32
    %43 = vector.broadcast %cst_23 : f32 to vector<8x1xf32>
    %44 = arith.divf %43, %42 : vector<8x1xf32>
    %c0_24 = arith.constant 0 : index
    %c0_25 = arith.constant 0 : index
    %45 = vector.load %arg8[%c0_24, %c0_25] : memref<8x1xf32, #tpu.memory_space<vmem>>, vector<8x1xf32>
    tpu.vector_store %arg8[%c0_24, %c0_25], %44 {strides = array<i32>} : memref<8x1xf32, #tpu.memory_space<vmem>>, vector<8x1xf32>,
    return
  }
  func.func @transform_0(%arg0: i32) -> (i32, i32) {
    %c0_i32 = arith.constant 0 : i32
    %c0_i32_0 = arith.constant 0 : i32
    return %arg0, %c0_i32 : i32, i32
  }
  func.func @transform_1(%arg0: i32) -> (i32, i32) {
    %c0_i32 = arith.constant 0 : i32
    %c0_i32_0 = arith.constant 0 : i32
    %c0_i32_1 = arith.constant 0 : i32
    return %c0_i32, %c0_i32_0 : i32, i32
  }
  func.func @transform_2(%arg0: i32) -> (i32, i32) {
    %c0_i32 = arith.constant 0 : i32
    %c0_i32_0 = arith.constant 0 : i32
    %c0_i32_1 = arith.constant 0 : i32
    return %c0_i32, %c0_i32_0 : i32, i32
  }
  func.func @transform_3(%arg0: i32) -> (i32, i32) {
    %c0_i32 = arith.constant 0 : i32
    %c0_i32_0 = arith.constant 0 : i32
    %c0_i32_1 = arith.constant 0 : i32
    return %c0_i32, %c0_i32_0 : i32, i32
  }
  func.func @transform_4(%arg0: i32) -> (i32, i32) {
    %c0_i32 = arith.constant 0 : i32
    %c0_i32_0 = arith.constant 0 : i32
    %c0_i32_1 = arith.constant 0 : i32
    return %c0_i32, %c0_i32_0 : i32, i32
  }
  func.func @transform_5(%arg0: i32) -> (i32, i32) {
    %c0_i32 = arith.constant 0 : i32
    %c0_i32_0 = arith.constant 0 : i32
    %c0_i32_1 = arith.constant 0 : i32
    return %c0_i32, %c0_i32_0 : i32, i32
  }
  func.func @transform_6(%arg0: i32) -> (i32, i32) {
    %c0_i32 = arith.constant 0 : i32
    %c0_i32_0 = arith.constant 0 : i32
    %c0_i32_1 = arith.constant 0 : i32
    return %c0_i32, %c0_i32_0 : i32, i32
  }
  func.func @transform_7(%arg0: i32) -> (i32, i32) {
    %c0_i32 = arith.constant 0 : i32
    %c0_i32_0 = arith.constant 0 : i32
    return %arg0, %c0_i32 : i32, i32
  }
}

module attributes {stable_mosaic.version = 11 : i64} {
  func.func @convexnet_kernel(%arg0: i32, %arg1: memref<8x16xf32, #tpu.memory_space<vmem>>, %arg2: memref<16x640xbf16, #tpu.memory_space<vmem>>, %arg3: memref<1x640xf32, #tpu.memory_space<vmem>>, %arg4: memref<128x128xbf16, #tpu.memory_space<vmem>>, %arg5: memref<128x128xbf16, #tpu.memory_space<vmem>>, %arg6: memref<128x128xbf16, #tpu.memory_space<vmem>>, %arg7: memref<1x128xf32, #tpu.memory_space<vmem>>, %arg8: memref<8x1xf32, #tpu.memory_space<vmem>>) attributes {dimension_semantics = [#tpu.dimension_semantics<parallel>], iteration_bounds = array<i64: 1>, scalar_prefetch = 0 : i64, scratch_operands = 0 : i64, tpu.core_type = #tpu.core_type<tc>, window_params = [{transform_indices = @transform_0, window_bounds = array<i64: 8, 16>}, {pipeline_mode = #tpu.pipeline_mode<synchronous>, transform_indices = @transform_1, window_bounds = array<i64: 16, 640>}, {pipeline_mode = #tpu.pipeline_mode<synchronous>, transform_indices = @transform_2, window_bounds = array<i64: 1, 640>}, {pipeline_mode = #tpu.pipeline_mode<synchronous>, transform_indices = @transform_3, window_bounds = array<i64: 128, 128>}, {pipeline_mode = #tpu.pipeline_mode<synchronous>, transform_indices = @transform_4, window_bounds = array<i64: 128, 128>}, {pipeline_mode = #tpu.pipeline_mode<synchronous>, transform_indices = @transform_5, window_bounds = array<i64: 128, 128>}, {pipeline_mode = #tpu.pipeline_mode<synchronous>, transform_indices = @transform_6, window_bounds = array<i64: 1, 128>}, {transform_indices = @transform_7, window_bounds = array<i64: 8, 1>}]} {
    %c0 = arith.constant 0 : index
    %c0_0 = arith.constant 0 : index
    %0 = vector.load %arg1[%c0, %c0_0] : memref<8x16xf32, #tpu.memory_space<vmem>>, vector<8x16xf32>
    %1 = arith.truncf %0 : vector<8x16xf32> to vector<8x16xbf16>
    %c0_1 = arith.constant 0 : index
    %c0_2 = arith.constant 0 : index
    %2 = vector.load %arg2[%c0_1, %c0_2] : memref<16x640xbf16, #tpu.memory_space<vmem>>, vector<16x640xbf16>
    %cst = arith.constant dense<0.000000e+00> : vector<8x640xf32>
    %3 = tpu.matmul %1, %2, %cst {dimension_numbers = #tpu.dot_dimension_numbers<[1], [0], [0], [1], [0, 0, 1, 1], [], []>} : vector<8x16xbf16>, vector<16x640xbf16>, vector<8x640xf32> -> vector<8x640xf32>
    %c0_3 = arith.constant 0 : index
    %c0_4 = arith.constant 0 : index
    %4 = vector.load %arg3[%c0_3, %c0_4] : memref<1x640xf32, #tpu.memory_space<vmem>>, vector<1x640xf32>
    %5 = vector.broadcast %4 : vector<1x640xf32> to vector<8x640xf32>
    %6 = arith.addf %3, %5 : vector<8x640xf32>
    %7 = vector.extract_strided_slice %6 {offsets = [0, 0], sizes = [8, 128], strides = [1, 1]} : vector<8x640xf32> to vector<8x128xf32>
    %cst_5 = arith.constant 0.000000e+00 : f32
    %8 = vector.broadcast %cst_5 : f32 to vector<8x128xf32>
    %9 = arith.maximumf %7, %8 : vector<8x128xf32>
    %10 = arith.truncf %9 : vector<8x128xf32> to vector<8x128xbf16>
    %c0_6 = arith.constant 0 : index
    %c0_7 = arith.constant 0 : index
    %11 = vector.load %arg4[%c0_6, %c0_7] : memref<128x128xbf16, #tpu.memory_space<vmem>>, vector<128x128xbf16>
    %cst_8 = arith.constant dense<0.000000e+00> : vector<8x128xf32>
    %12 = tpu.matmul %10, %11, %cst_8 {dimension_numbers = #tpu.dot_dimension_numbers<[1], [0], [0], [1], [0, 0, 1, 1], [], []>} : vector<8x128xbf16>, vector<128x128xbf16>, vector<8x128xf32> -> vector<8x128xf32>
    %13 = vector.extract_strided_slice %6 {offsets = [0, 128], sizes = [8, 128], strides = [1, 1]} : vector<8x640xf32> to vector<8x128xf32>
    %14 = arith.addf %12, %13 : vector<8x128xf32>
    %cst_9 = arith.constant 0.000000e+00 : f32
    %15 = vector.broadcast %cst_9 : f32 to vector<8x128xf32>
    %16 = arith.maximumf %14, %15 : vector<8x128xf32>
    %17 = arith.truncf %16 : vector<8x128xf32> to vector<8x128xbf16>
    %c0_10 = arith.constant 0 : index
    %c0_11 = arith.constant 0 : index
    %18 = vector.load %arg5[%c0_10, %c0_11] : memref<128x128xbf16, #tpu.memory_space<vmem>>, vector<128x128xbf16>
    %cst_12 = arith.constant dense<0.000000e+00> : vector<8x128xf32>
    %19 = tpu.matmul %17, %18, %cst_12 {dimension_numbers = #tpu.dot_dimension_numbers<[1], [0], [0], [1], [0, 0, 1, 1], [], []>} : vector<8x128xbf16>, vector<128x128xbf16>, vector<8x128xf32> -> vector<8x128xf32>
    %20 = vector.extract_strided_slice %6 {offsets = [0, 256], sizes = [8, 128], strides = [1, 1]} : vector<8x640xf32> to vector<8x128xf32>
    %21 = arith.addf %19, %20 : vector<8x128xf32>
    %cst_13 = arith.constant 0.000000e+00 : f32
    %22 = vector.broadcast %cst_13 : f32 to vector<8x128xf32>
    %23 = arith.maximumf %21, %22 : vector<8x128xf32>
    %24 = arith.truncf %23 : vector<8x128xf32> to vector<8x128xbf16>
    %c0_14 = arith.constant 0 : index
    %c0_15 = arith.constant 0 : index
    %25 = vector.load %arg6[%c0_14, %c0_15] : memref<128x128xbf16, #tpu.memory_space<vmem>>, vector<128x128xbf16>
    %cst_16 = arith.constant dense<0.000000e+00> : vector<8x128xf32>
    %26 = tpu.matmul %24, %25, %cst_16 {dimension_numbers = #tpu.dot_dimension_numbers<[1], [0], [0], [1], [0, 0, 1, 1], [], []>} : vector<8x128xbf16>, vector<128x128xbf16>, vector<8x128xf32> -> vector<8x128xf32>
    %27 = vector.extract_strided_slice %6 {offsets = [0, 384], sizes = [8, 128], strides = [1, 1]} : vector<8x640xf32> to vector<8x128xf32>
    %28 = arith.addf %26, %27 : vector<8x128xf32>
    %cst_17 = arith.constant 0.000000e+00 : f32
    %29 = vector.broadcast %cst_17 : f32 to vector<8x128xf32>
    %30 = arith.maximumf %28, %29 : vector<8x128xf32>
    %c0_18 = arith.constant 0 : index
    %c0_19 = arith.constant 0 : index
    %31 = vector.load %arg7[%c0_18, %c0_19] : memref<1x128xf32, #tpu.memory_space<vmem>>, vector<1x128xf32>
    %32 = vector.broadcast %31 : vector<1x128xf32> to vector<8x128xf32>
    %33 = arith.mulf %30, %32 : vector<8x128xf32>
    %cst_20 = arith.constant dense<0.000000e+00> : vector<8xf32>
    %34 = vector.multi_reduction <add>, %33, %cst_20 [1] : vector<8x128xf32> to vector<8xf32>
    %35 = vector.shape_cast %34 : vector<8xf32> to vector<8x1xf32>
    %36 = vector.extract_strided_slice %6 {offsets = [0, 512], sizes = [8, 1], strides = [1, 1]} : vector<8x640xf32> to vector<8x1xf32>
    %37 = arith.addf %35, %36 : vector<8x1xf32>
    %cst_21 = arith.constant 0.000000e+00 : f32
    %38 = vector.broadcast %cst_21 : f32 to vector<8x1xf32>
    %39 = arith.subf %38, %37 : vector<8x1xf32>
    %40 = math.exp %39 : vector<8x1xf32>
    %cst_22 = arith.constant 1.000000e+00 : f32
    %41 = vector.broadcast %cst_22 : f32 to vector<8x1xf32>
    %42 = arith.addf %41, %40 : vector<8x1xf32>
    %cst_23 = arith.constant 1.000000e+00 : f32
    %43 = vector.broadcast %cst_23 : f32 to vector<8x1xf32>
    %44 = arith.divf %43, %42 : vector<8x1xf32>
    %c0_24 = arith.constant 0 : index
    %c0_25 = arith.constant 0 : index
    %45 = vector.load %arg8[%c0_24, %c0_25] : memref<8x1xf32, #tpu.memory_space<vmem>>, vector<8x1xf32>
    tpu.vector_store %arg8[%c0_24, %c0_25], %44 {strides = array<i32>} : memref<8x1xf32, #tpu.memory_space<vmem>>, vector<8x1xf32>,
    return
  }
  func.func @transform_0(%arg0: i32) -> (i32, i32) {
    %c0_i32 = arith.constant 0 : i32
    %c0_i32_0 = arith.constant 0 : i32
    return %arg0, %c0_i32 : i32, i32
  }
  func.func @transform_1(%arg0: i32) -> (i32, i32) {
    %c0_i32 = arith.constant 0 : i32
    %c0_i32_0 = arith.constant 0 : i32
    %c0_i32_1 = arith.constant 0 : i32
    return %c0_i32, %c0_i32_0 : i32, i32
  }
  func.func @transform_2(%arg0: i32) -> (i32, i32) {
    %c0_i32 = arith.constant 0 : i32
    %c0_i32_0 = arith.constant 0 : i32
    %c0_i32_1 = arith.constant 0 : i32
    return %c0_i32, %c0_i32_0 : i32, i32
  }
  func.func @transform_3(%arg0: i32) -> (i32, i32) {
    %c0_i32 = arith.constant 0 : i32
    %c0_i32_0 = arith.constant 0 : i32
    %c0_i32_1 = arith.constant 0 : i32
    return %c0_i32, %c0_i32_0 : i32, i32
  }
  func.func @transform_4(%arg0: i32) -> (i32, i32) {
    %c0_i32 = arith.constant 0 : i32
    %c0_i32_0 = arith.constant 0 : i32
    %c0_i32_1 = arith.constant 0 : i32
    return %c0_i32, %c0_i32_0 : i32, i32
  }
  func.func @transform_5(%arg0: i32) -> (i32, i32) {
    %c0_i32 = arith.constant 0 : i32
    %c0_i32_0 = arith.constant 0 : i32
    %c0_i32_1 = arith.constant 0 : i32
    return %c0_i32, %c0_i32_0 : i32, i32
  }
  func.func @transform_6(%arg0: i32) -> (i32, i32) {
    %c0_i32 = arith.constant 0 : i32
    %c0_i32_0 = arith.constant 0 : i32
    %c0_i32_1 = arith.constant 0 : i32
    return %c0_i32, %c0_i32_0 : i32, i32
  }
  func.func @transform_7(%arg0: i32) -> (i32, i32) {
    %c0_i32 = arith.constant 0 : i32
    %c0_i32_0 = arith.constant 0 : i32
    return %arg0, %c0_i32 : i32, i32
  }
}

</mosaic_0001>

<llo_original>
// kernel: tpu_custom_call.1
$region0: #{tpu_custom_call.1}
  #allocation0 [shape = 'u32[]', space=smem, size = 0x4, offset = 0x4, fixed_abs, tag = 'smem constant byte address 0x4 - core index']
  #allocation1 [shape = 'u32[144,128]{1,0:T(1,128)}', space=vmem, size = 0x12000, scoped, tag = 'internal scratch']
  %s0 = inlined_call_operand.hbm [shape: f32[8,16], index: 0, kind: input, shape index: {}]
  %s1 = inlined_call_operand.hbm [shape: bf16[16,640], index: 1, kind: input, shape index: {}]
  %s2 = inlined_call_operand.vmem [shape: f32[1,640], index: 2, kind: input, shape index: {}]
  %s3 = inlined_call_operand.hbm [shape: bf16[128,128], index: 3, kind: input, shape index: {}]
  %s4 = inlined_call_operand.hbm [shape: bf16[128,128], index: 4, kind: input, shape index: {}]
  %s5 = inlined_call_operand.hbm [shape: bf16[128,128], index: 5, kind: input, shape index: {}]
  %s6 = inlined_call_operand.vmem [shape: f32[1,128], index: 6, kind: input, shape index: {}]
  %s7 = inlined_call_operand.vmem [shape: f32[8,1], index: 7, kind: output, shape index: {}]
  %s8 = sld [smem:[#allocation0]]
  $region58: #{tpu_custom_call.1} parent=0
    _
  %s10 = ssub.s32 1, %s8
  %s11 = scalar_select 0, %s10, %s8
  $region1: #{tpu_custom_call.1} parent=0
    #allocation2 [shape = 'u8[4096]{0}', space=vmem, size = 0x1000, scoped, tag = 'input window, operand 0, single buffered']
    #allocation3 [shape = 's32[1]{0}', space=sflag, size = 0x4, scoped, tag = 'scoped memory for tpu_custom_call.1']
    #allocation4 [shape = 'u8[20480]{0}', space=vmem, size = 0x5000, scoped, tag = 'input window, operand 1, single buffered']
    #allocation5 [shape = 's32[1]{0}', space=sflag, size = 0x4, scoped, tag = 'scoped memory for tpu_custom_call.1']
    #allocation6 [shape = 'u8[32768]{0}', space=vmem, size = 0x8000, scoped, tag = 'input window, operand 3, single buffered']
    #allocation7 [shape = 'u8[32768]{0}', space=vmem, size = 0x8000, scoped, tag = 'input window, operand 4, single buffered']
    #allocation8 [shape = 's32[1]{0}', space=sflag, size = 0x4, scoped, tag = 'scoped memory for tpu_custom_call.1']
    #allocation9 [shape = 'u8[32768]{0}', space=vmem, size = 0x8000, scoped, tag = 'input window, operand 5, single buffered']
    %12 = vsyncpa [#allocation3], 0
    %13 = vsyncpa [#allocation5], 0
    %14 = vsyncpa [#allocation8], 0
    // Predicated region
    $region2: #{tpu_custom_call.1} parent=1 // pred_check
      _
    $region3: #{tpu_custom_call.1} parent=1 // pred_check_branch
      %16 = sbr.rel (0) target = $region5
    $region4: #{tpu_custom_call.1} parent=1 // pred_region
      %s18 = ssub.s32 128, 128
      %19 = vsyncadd [#allocation3], %s18
      %s21 = sshll.u32 [#allocation2], 4
      %s22 = int_to_ptr.vmem [resolvable:$true] %s21
      %24 = dma.hbm_to_vmem [thread:$0]  %s0, 128, %s22, [#allocation3]
    $region5: #{tpu_custom_call.1} parent=1 // pred_fallthru
      _
    // Predicated region
    $region6: #{tpu_custom_call.1} parent=1 // pred_check
      _
    $region7: #{tpu_custom_call.1} parent=1 // pred_check_branch
      %26 = sbr.rel (0) target = $region9
    $region8: #{tpu_custom_call.1} parent=1 // pred_region
      %s28 = ssub.s32 640, 640
      %29 = vsyncadd [#allocation5], %s28
      %s30 = sshll.u32 [#allocation4], 4
      %s31 = int_to_ptr.vmem [resolvable:$true] %s30
      %36 = dma.hbm_to_vmem [thread:$0]  %s1, 640, %s31, [#allocation5], 320, 320, 20
    $region9: #{tpu_custom_call.1} parent=1 // pred_fallthru
      _
    // Predicated region
    $region10: #{tpu_custom_call.1} parent=1 // pred_check
      _
    $region11: #{tpu_custom_call.1} parent=1 // pred_check_branch
      %38 = sbr.rel (0) target = $region13
    $region12: #{tpu_custom_call.1} parent=1 // pred_region
      _
    $region13: #{tpu_custom_call.1} parent=1 // pred_fallthru
      _
    // Predicated region
    $region14: #{tpu_custom_call.1} parent=1 // pred_check
      _
    $region15: #{tpu_custom_call.1} parent=1 // pred_check_branch
      %40 = sbr.rel (0) target = $region17
    $region16: #{tpu_custom_call.1} parent=1 // pred_region
      %s42 = ssub.s32 1024, 1024
      %43 = vsyncadd [#allocation5], %s42
      %s44 = sshll.u32 [#allocation6], 4
      %s45 = int_to_ptr.vmem [resolvable:$true] %s44
      %50 = dma.hbm_to_vmem [thread:$0]  %s3, 1024, %s45, [#allocation5], 64, 64, 4
    $region17: #{tpu_custom_call.1} parent=1 // pred_fallthru
      _
    // Predicated region
    $region18: #{tpu_custom_call.1} parent=1 // pred_check
      _
    $region19: #{tpu_custom_call.1} parent=1 // pred_check_branch
      %52 = sbr.rel (0) target = $region21
    $region20: #{tpu_custom_call.1} parent=1 // pred_region
      %s54 = ssub.s32 1024, 1024
      %55 = vsyncadd [#allocation8], %s54
      %s56 = sshll.u32 [#allocation7], 4
      %s57 = int_to_ptr.vmem [resolvable:$true] %s56
      %62 = dma.hbm_to_vmem [thread:$0]  %s4, 1024, %s57, [#allocation8], 64, 64, 4
    $region21: #{tpu_custom_call.1} parent=1 // pred_fallthru
      _
    // Predicated region
    $region22: #{tpu_custom_call.1} parent=1 // pred_check
      _
    $region23: #{tpu_custom_call.1} parent=1 // pred_check_branch
      %64 = sbr.rel (0) target = $region25
    $region24: #{tpu_custom_call.1} parent=1 // pred_region
      %s66 = ssub.s32 1024, 1024
      %67 = vsyncadd [#allocation8], %s66
      %s68 = sshll.u32 [#allocation9], 4
      %s69 = int_to_ptr.vmem [resolvable:$true] %s68
      %74 = dma.hbm_to_vmem [thread:$0]  %s5, 1024, %s69, [#allocation8], 64, 64, 4
    $region25: #{tpu_custom_call.1} parent=1 // pred_fallthru
      _
    // Predicated region
    $region26: #{tpu_custom_call.1} parent=1 // pred_check
      _
    $region27: #{tpu_custom_call.1} parent=1 // pred_check_branch
      %76 = sbr.rel (0) target = $region29
    $region28: #{tpu_custom_call.1} parent=1 // pred_region
      _
    $region29: #{tpu_custom_call.1} parent=1 // pred_fallthru
      _
    // Predicated region
    $region30: #{tpu_custom_call.1} parent=1 // pred_check
      _
    $region31: #{tpu_custom_call.1} parent=1 // pred_check_branch
      %78 = sbr.rel (0) target = $region33
    $region32: #{tpu_custom_call.1} parent=1 // pred_region
      %79 = dma.done [#allocation3], 128
    $region33: #{tpu_custom_call.1} parent=1 // pred_fallthru
      _
    // Predicated region
    $region34: #{tpu_custom_call.1} parent=1 // pred_check
      _
    $region35: #{tpu_custom_call.1} parent=1 // pred_check_branch
      %81 = sbr.rel (0) target = $region37
    $region36: #{tpu_custom_call.1} parent=1 // pred_region
      %82 = dma.done [#allocation5], 640
    $region37: #{tpu_custom_call.1} parent=1 // pred_fallthru
      _
    // Predicated region
    $region38: #{tpu_custom_call.1} parent=1 // pred_check
      _
    $region39: #{tpu_custom_call.1} parent=1 // pred_check_branch
      %84 = sbr.rel (0) target = $region41
    $region40: #{tpu_custom_call.1} parent=1 // pred_region
      %85 = dma.done [#allocation5], 1024
    $region41: #{tpu_custom_call.1} parent=1 // pred_fallthru
      _
    // Predicated region
    $region42: #{tpu_custom_call.1} parent=1 // pred_check
      _
    $region43: #{tpu_custom_call.1} parent=1 // pred_check_branch
      %87 = sbr.rel (0) target = $region45
    $region44: #{tpu_custom_call.1} parent=1 // pred_region
      %88 = dma.done [#allocation8], 1024
    $region45: #{tpu_custom_call.1} parent=1 // pred_fallthru
      _
    // Predicated region
    $region46: #{tpu_custom_call.1} parent=1 // pred_check
      _
    $region47: #{tpu_custom_call.1} parent=1 // pred_check_branch
      %90 = sbr.rel (0) target = $region49
    $region48: #{tpu_custom_call.1} parent=1 // pred_region
      %91 = dma.done [#allocation8], 1024
    $region49: #{tpu_custom_call.1} parent=1 // pred_fallthru
      _
    %v93 = vld [vmem:[#allocation2] sm:$0xff]
    %v94 = vpack.c.bf16 %v93, %v93
    %v95 = vld [vmem:[#allocation4] sm:$0xff]
    %v96 = vld [vmem:[#allocation4 + $0x8] sm:$0xff]
    %v97 = vld [vmem:[#allocation4 + $0x10] sm:$0xf]
    %v98 = vld [vmem:[#allocation4 + $0x14] sm:$0xff]
    %v99 = vld [vmem:[#allocation4 + $0x1c] sm:$0xff]
    %v100 = vld [vmem:[#allocation4 + $0x24] sm:$0xf]
    %v101 = vld [vmem:[%s2] sm:$0x1f]
    %v103 = vlaneseq
    %v104 = vshrl.u32 %v103, 7
    %v105 = vsub.s32 0, %v104
    %v106 = vrot.slane %v101, %v105
    %v107 = vlaneseq
    %v108 = vshrl.u32 %v107, 7
    %v109 = vsub.s32 1, %v108
    %v110 = vrot.slane %v101, %v109
    %v111 = vlaneseq
    %v112 = vshrl.u32 %v111, 7
    %v113 = vsub.s32 2, %v112
    %v114 = vrot.slane %v101, %v113
    %v115 = vlaneseq
    %v116 = vshrl.u32 %v115, 7
    %v117 = vsub.s32 3, %v116
    %v118 = vrot.slane %v101, %v117
    %v119 = vlaneseq
    %v120 = vshrl.u32 %v119, 7
    %v121 = vsub.s32 4, %v120
    %v122 = vrot.slane %v101, %v121
    %v134 = vunpack.c.l.b16 %v95
    %v135 = vunpack.c.h.b16 %v95
    %v136 = vunpack.c.l.b16 %v96
    %v137 = vunpack.c.h.b16 %v96
    %v138 = vunpack.c.l.b16 %v97
    %v139 = vunpack.c.l.b16 %v98
    %v140 = vunpack.c.h.b16 %v98
    %v141 = vunpack.c.l.b16 %v99
    %v142 = vunpack.c.h.b16 %v99
    %v143 = vunpack.c.l.b16 %v100
    %v144 = vpack.c.b16 %v139, %v134
    %v145 = vpack.c.b16 %v140, %v135
    %v146 = vpack.c.b16 %v141, %v136
    %v147 = vpack.c.b16 %v142, %v137
    %v148 = vpack.c.b16 %v143, %v138
    %vm154 = vcmask 130048
    %v156 = vsel %vm154, %v94, 0
    %158 = vmatprep.subr.bf16.mxu0 %v145
    %159 = vmatpush1.bf16.msra.mxu0 %v144
    %160 = vmatprep.subr.bf16.mxu0 0
    %161 = vmatpush1.bf16.msra.mxu0 0
    %162 = vmatprep.subr.bf16.mxu0 0
    %163 = vmatpush1.bf16.msra.mxu0 0
    %164 = vmatprep.subr.bf16.mxu0 0
    %165 = vmatpush1.bf16.msra.mxu0 0
    %166 = vmatprep.subr.bf16.mxu0 0
    %167 = vmatpush1.bf16.msra.mxu0 0
    %168 = vmatprep.subr.bf16.mxu0 0
    %169 = vmatpush1.bf16.msra.mxu0 0
    %170 = vmatprep.subr.bf16.mxu0 0
    %171 = vmatpush1.bf16.msra.mxu0 0
    %172 = vmatprep.subr.bf16.mxu0 0
    %173 = vmatpush1.bf16.msra.mxu0 0
    %174 = vmatprep.subr.bf16.mxu0 0
    %175 = vmatpush1.bf16.msra.mxu0 0
    %176 = vmatprep.subr.bf16.mxu0 0
    %177 = vmatpush1.bf16.msra.mxu0 0
    %178 = vmatprep.subr.bf16.mxu0 0
    %179 = vmatpush1.bf16.msra.mxu0 0
    %180 = vmatprep.subr.bf16.mxu0 0
    %181 = vmatpush1.bf16.msra.mxu0 0
    %182 = vmatprep.subr.bf16.mxu0 0
    %183 = vmatpush1.bf16.msra.mxu0 0
    %184 = vmatprep.subr.bf16.mxu0 0
    %185 = vmatpush1.bf16.msra.mxu0 0
    %186 = vmatprep.subr.bf16.mxu0 0
    %187 = vmatpush1.bf16.msra.mxu0 0
    %188 = vmatprep.subr.bf16.mxu0 0
    %189 = vmatpush1.bf16.msra.mxu0 0
    %190 = vmatprep.mubr.bf16.mxu0 0
    %191 = vmatmul.mubr.bf16.gmra.mrb[0].mxu0 %v156
    %v192 = vpop.f32.mrb[0].mxu0
    %v193 = vadd.f32 %v106, %v192
    %v194 = vpop.f32.mrb[0].mxu0
    %v195 = vadd.f32 %v110, %v194
    %v196 = vpop.f32.mrb[0].mxu0
    %v197 = vpop.f32.mrb[0].mxu0
    %198 = vdwg.mxu0
    %199 = vmatprep.subr.bf16.mxu0 %v147
    %200 = vmatpush1.bf16.msra.mxu0 %v146
    %201 = vmatprep.subr.bf16.mxu0 0
    %202 = vmatpush1.bf16.msra.mxu0 0
    %203 = vmatprep.subr.bf16.mxu0 0
    %204 = vmatpush1.bf16.msra.mxu0 0
    %205 = vmatprep.subr.bf16.mxu0 0
    %206 = vmatpush1.bf16.msra.mxu0 0
    %207 = vmatprep.subr.bf16.mxu0 0
    %208 = vmatpush1.bf16.msra.mxu0 0
    %209 = vmatprep.subr.bf16.mxu0 0
    %210 = vmatpush1.bf16.msra.mxu0 0
    %211 = vmatprep.subr.bf16.mxu0 0
    %212 = vmatpush1.bf16.msra.mxu0 0
    %213 = vmatprep.subr.bf16.mxu0 0
    %214 = vmatpush1.bf16.msra.mxu0 0
    %215 = vmatprep.subr.bf16.mxu0 0
    %216 = vmatpush1.bf16.msra.mxu0 0
    %217 = vmatprep.subr.bf16.mxu0 0
    %218 = vmatpush1.bf16.msra.mxu0 0
    %219 = vmatprep.subr.bf16.mxu0 0
    %220 = vmatpush1.bf16.msra.mxu0 0
    %221 = vmatprep.subr.bf16.mxu0 0
    %222 = vmatpush1.bf16.msra.mxu0 0
    %223 = vmatprep.subr.bf16.mxu0 0
    %224 = vmatpush1.bf16.msra.mxu0 0
    %225 = vmatprep.subr.bf16.mxu0 0
    %226 = vmatpush1.bf16.msra.mxu0 0
    %227 = vmatprep.subr.bf16.mxu0 0
    %228 = vmatpush1.bf16.msra.mxu0 0
    %229 = vmatprep.subr.bf16.mxu0 0
    %230 = vmatpush1.bf16.msra.mxu0 0
    %231 = vmatprep.mubr.bf16.mxu0 0
    %232 = vmatmul.mubr.bf16.gmra.mrb[0].mxu0 %v156
    %v233 = vpop.f32.mrb[0].mxu0
    %v234 = vadd.f32 %v114, %v233
    %v235 = vpop.f32.mrb[0].mxu0
    %v236 = vadd.f32 %v118, %v235
    %v237 = vpop.f32.mrb[0].mxu0
    %v238 = vpop.f32.mrb[0].mxu0
    %239 = vdwg.mxu0
    %240 = vmatprep.subr.bf16.mxu0 0
    %241 = vmatpush1.bf16.msra.mxu0 %v148
    %242 = vmatprep.subr.bf16.mxu0 0
    %243 = vmatpush1.bf16.msra.mxu0 0
    %244 = vmatprep.subr.bf16.mxu0 0
    %245 = vmatpush1.bf16.msra.mxu0 0
    %246 = vmatprep.subr.bf16.mxu0 0
    %247 = vmatpush1.bf16.msra.mxu0 0
    %248 = vmatprep.subr.bf16.mxu0 0
    %249 = vmatpush1.bf16.msra.mxu0 0
    %250 = vmatprep.subr.bf16.mxu0 0
    %251 = vmatpush1.bf16.msra.mxu0 0
    %252 = vmatprep.subr.bf16.mxu0 0
    %253 = vmatpush1.bf16.msra.mxu0 0
    %254 = vmatprep.subr.bf16.mxu0 0
    %255 = vmatpush1.bf16.msra.mxu0 0
    %256 = vmatprep.subr.bf16.mxu0 0
    %257 = vmatpush1.bf16.msra.mxu0 0
    %258 = vmatprep.subr.bf16.mxu0 0
    %259 = vmatpush1.bf16.msra.mxu0 0
    %260 = vmatprep.subr.bf16.mxu0 0
    %261 = vmatpush1.bf16.msra.mxu0 0
    %262 = vmatprep.subr.bf16.mxu0 0
    %263 = vmatpush1.bf16.msra.mxu0 0
    %264 = vmatprep.subr.bf16.mxu0 0
    %265 = vmatpush1.bf16.msra.mxu0 0
    %266 = vmatprep.subr.bf16.mxu0 0
    %267 = vmatpush1.bf16.msra.mxu0 0
    %268 = vmatprep.subr.bf16.mxu0 0
    %269 = vmatpush1.bf16.msra.mxu0 0
    %270 = vmatprep.subr.bf16.mxu0 0
    %271 = vmatpush1.bf16.msra.mxu0 0
    %272 = vmatprep.mubr.bf16.mxu0 0
    %273 = vmatmul.mubr.bf16.gmra.mrb[0].mxu0 %v156
    %v274 = vpop.f32.mrb[0].mxu0
    %v275 = vadd.f32 %v122, %v274
    %v276 = vpop.f32.mrb[0].mxu0
    %v277 = vpop.f32.mrb[0].mxu0
    %v278 = vpop.f32.mrb[0].mxu0
    %279 = vdwg.mxu0
    %v280 = vmax.f32 %v193, 0.0
    %v281 = vpack.c.bf16 %v280, %v280
    %v282 = vld [vmem:[#allocation6] sm:$0xf]
    %v283 = vld [vmem:[#allocation6 + $0x4] sm:$0xf]
    %v284 = vld [vmem:[#allocation6 + $0x8] sm:$0xf]
    %v285 = vld [vmem:[#allocation6 + $0xc] sm:$0xf]
    %v286 = vld [vmem:[#allocation6 + $0x10] sm:$0xf]
    %v287 = vld [vmem:[#allocation6 + $0x14] sm:$0xf]
    %v288 = vld [vmem:[#allocation6 + $0x18] sm:$0xf]
    %v289 = vld [vmem:[#allocation6 + $0x1c] sm:$0xf]
    %v290 = vld [vmem:[#allocation6 + $0x20] sm:$0xf]
    %v291 = vld [vmem:[#allocation6 + $0x24] sm:$0xf]
    %v292 = vld [vmem:[#allocation6 + $0x28] sm:$0xf]
    %v293 = vld [vmem:[#allocation6 + $0x2c] sm:$0xf]
    %v294 = vld [vmem:[#allocation6 + $0x30] sm:$0xf]
    %v295 = vld [vmem:[#allocation6 + $0x34] sm:$0xf]
    %v296 = vld [vmem:[#allocation6 + $0x38] sm:$0xf]
    %v297 = vld [vmem:[#allocation6 + $0x3c] sm:$0xf]
    %v314 = vunpack.c.l.b16 %v282
    %v315 = vunpack.c.l.b16 %v283
    %v316 = vunpack.c.l.b16 %v284
    %v317 = vunpack.c.l.b16 %v285
    %v318 = vunpack.c.l.b16 %v286
    %v319 = vunpack.c.l.b16 %v287
    %v320 = vunpack.c.l.b16 %v288
    %v321 = vunpack.c.l.b16 %v289
    %v322 = vunpack.c.l.b16 %v290
    %v323 = vunpack.c.l.b16 %v291
    %v324 = vunpack.c.l.b16 %v292
    %v325 = vunpack.c.l.b16 %v293
    %v326 = vunpack.c.l.b16 %v294
    %v327 = vunpack.c.l.b16 %v295
    %v328 = vunpack.c.l.b16 %v296
    %v329 = vunpack.c.l.b16 %v297
    %v330 = vpack.c.b16 %v315, %v314
    %v331 = vpack.c.b16 %v317, %v316
    %v332 = vpack.c.b16 %v319, %v318
    %v333 = vpack.c.b16 %v321, %v320
    %v334 = vpack.c.b16 %v323, %v322
    %v335 = vpack.c.b16 %v325, %v324
    %v336 = vpack.c.b16 %v327, %v326
    %v337 = vpack.c.b16 %v329, %v328
    %346 = vmatprep.subr.bf16.mxu0 0
    %347 = vmatpush1.bf16.msra.mxu0 %v330
    %348 = vmatprep.subr.bf16.mxu0 0
    %349 = vmatpush1.bf16.msra.mxu0 %v331
    %350 = vmatprep.subr.bf16.mxu0 0
    %351 = vmatpush1.bf16.msra.mxu0 %v332
    %352 = vmatprep.subr.bf16.mxu0 0
    %353 = vmatpush1.bf16.msra.mxu0 %v333
    %354 = vmatprep.subr.bf16.mxu0 0
    %355 = vmatpush1.bf16.msra.mxu0 %v334
    %356 = vmatprep.subr.bf16.mxu0 0
    %357 = vmatpush1.bf16.msra.mxu0 %v335
    %358 = vmatprep.subr.bf16.mxu0 0
    %359 = vmatpush1.bf16.msra.mxu0 %v336
    %360 = vmatprep.subr.bf16.mxu0 0
    %361 = vmatpush1.bf16.msra.mxu0 %v337
    %362 = vmatprep.subr.bf16.mxu0 0
    %363 = vmatpush1.bf16.msra.mxu0 0
    %364 = vmatprep.subr.bf16.mxu0 0
    %365 = vmatpush1.bf16.msra.mxu0 0
    %366 = vmatprep.subr.bf16.mxu0 0
    %367 = vmatpush1.bf16.msra.mxu0 0
    %368 = vmatprep.subr.bf16.mxu0 0
    %369 = vmatpush1.bf16.msra.mxu0 0
    %370 = vmatprep.subr.bf16.mxu0 0
    %371 = vmatpush1.bf16.msra.mxu0 0
    %372 = vmatprep.subr.bf16.mxu0 0
    %373 = vmatpush1.bf16.msra.mxu0 0
    %374 = vmatprep.subr.bf16.mxu0 0
    %375 = vmatpush1.bf16.msra.mxu0 0
    %376 = vmatprep.subr.bf16.mxu0 0
    %377 = vmatpush1.bf16.msra.mxu0 0
    %378 = vmatprep.mubr.bf16.mxu0 0
    %379 = vmatmul.mubr.bf16.gmra.mrb[0].mxu0 %v281
    %v380 = vpop.f32.mrb[0].mxu0
    %v381 = vadd.f32 %v195, %v380
    %v382 = vpop.f32.mrb[0].mxu0
    %v383 = vpop.f32.mrb[0].mxu0
    %v384 = vpop.f32.mrb[0].mxu0
    %385 = vdwg.mxu0
    %v386 = vmax.f32 %v381, 0.0
    %v387 = vpack.c.bf16 %v386, %v386
    %v388 = vld [vmem:[#allocation7] sm:$0xf]
    %v389 = vld [vmem:[#allocation7 + $0x4] sm:$0xf]
    %v390 = vld [vmem:[#allocation7 + $0x8] sm:$0xf]
    %v391 = vld [vmem:[#allocation7 + $0xc] sm:$0xf]
    %v392 = vld [vmem:[#allocation7 + $0x10] sm:$0xf]
    %v393 = vld [vmem:[#allocation7 + $0x14] sm:$0xf]
    %v394 = vld [vmem:[#allocation7 + $0x18] sm:$0xf]
    %v395 = vld [vmem:[#allocation7 + $0x1c] sm:$0xf]
    %v396 = vld [vmem:[#allocation7 + $0x20] sm:$0xf]
    %v397 = vld [vmem:[#allocation7 + $0x24] sm:$0xf]
    %v398 = vld [vmem:[#allocation7 + $0x28] sm:$0xf]
    %v399 = vld [vmem:[#allocation7 + $0x2c] sm:$0xf]
    %v400 = vld [vmem:[#allocation7 + $0x30] sm:$0xf]
    %v401 = vld [vmem:[#allocation7 + $0x34] sm:$0xf]
    %v402 = vld [vmem:[#allocation7 + $0x38] sm:$0xf]
    %v403 = vld [vmem:[#allocation7 + $0x3c] sm:$0xf]
    %v420 = vunpack.c.l.b16 %v388
    %v421 = vunpack.c.l.b16 %v389
    %v422 = vunpack.c.l.b16 %v390
    %v423 = vunpack.c.l.b16 %v391
    %v424 = vunpack.c.l.b16 %v392
    %v425 = vunpack.c.l.b16 %v393
    %v426 = vunpack.c.l.b16 %v394
    %v427 = vunpack.c.l.b16 %v395
    %v428 = vunpack.c.l.b16 %v396
    %v429 = vunpack.c.l.b16 %v397
    %v430 = vunpack.c.l.b16 %v398
    %v431 = vunpack.c.l.b16 %v399
    %v432 = vunpack.c.l.b16 %v400
    %v433 = vunpack.c.l.b16 %v401
    %v434 = vunpack.c.l.b16 %v402
    %v435 = vunpack.c.l.b16 %v403
    %v436 = vpack.c.b16 %v421, %v420
    %v437 = vpack.c.b16 %v423, %v422
    %v438 = vpack.c.b16 %v425, %v424
    %v439 = vpack.c.b16 %v427, %v426
    %v440 = vpack.c.b16 %v429, %v428
    %v441 = vpack.c.b16 %v431, %v430
    %v442 = vpack.c.b16 %v433, %v432
    %v443 = vpack.c.b16 %v435, %v434
    %452 = vmatprep.subr.bf16.mxu0 0
    %453 = vmatpush1.bf16.msra.mxu0 %v436
    %454 = vmatprep.subr.bf16.mxu0 0
    %455 = vmatpush1.bf16.msra.mxu0 %v437
    %456 = vmatprep.subr.bf16.mxu0 0
    %457 = vmatpush1.bf16.msra.mxu0 %v438
    %458 = vmatprep.subr.bf16.mxu0 0
    %459 = vmatpush1.bf16.msra.mxu0 %v439
    %460 = vmatprep.subr.bf16.mxu0 0
    %461 = vmatpush1.bf16.msra.mxu0 %v440
    %462 = vmatprep.subr.bf16.mxu0 0
    %463 = vmatpush1.bf16.msra.mxu0 %v441
    %464 = vmatprep.subr.bf16.mxu0 0
    %465 = vmatpush1.bf16.msra.mxu0 %v442
    %466 = vmatprep.subr.bf16.mxu0 0
    %467 = vmatpush1.bf16.msra.mxu0 %v443
    %468 = vmatprep.subr.bf16.mxu0 0
    %469 = vmatpush1.bf16.msra.mxu0 0
    %470 = vmatprep.subr.bf16.mxu0 0
    %471 = vmatpush1.bf16.msra.mxu0 0
    %472 = vmatprep.subr.bf16.mxu0 0
    %473 = vmatpush1.bf16.msra.mxu0 0
    %474 = vmatprep.subr.bf16.mxu0 0
    %475 = vmatpush1.bf16.msra.mxu0 0
    %476 = vmatprep.subr.bf16.mxu0 0
    %477 = vmatpush1.bf16.msra.mxu0 0
    %478 = vmatprep.subr.bf16.mxu0 0
    %479 = vmatpush1.bf16.msra.mxu0 0
    %480 = vmatprep.subr.bf16.mxu0 0
    %481 = vmatpush1.bf16.msra.mxu0 0
    %482 = vmatprep.subr.bf16.mxu0 0
    %483 = vmatpush1.bf16.msra.mxu0 0
    %484 = vmatprep.mubr.bf16.mxu0 0
    %485 = vmatmul.mubr.bf16.gmra.mrb[0].mxu0 %v387
    %v486 = vpop.f32.mrb[0].mxu0
    %v487 = vadd.f32 %v234, %v486
    %v488 = vpop.f32.mrb[0].mxu0
    %v489 = vpop.f32.mrb[0].mxu0
    %v490 = vpop.f32.mrb[0].mxu0
    %491 = vdwg.mxu0
    %v492 = vmax.f32 %v487, 0.0
    %v493 = vpack.c.bf16 %v492, %v492
    %v494 = vld [vmem:[#allocation9] sm:$0xf]
    %v495 = vld [vmem:[#allocation9 + $0x4] sm:$0xf]
    %v496 = vld [vmem:[#allocation9 + $0x8] sm:$0xf]
    %v497 = vld [vmem:[#allocation9 + $0xc] sm:$0xf]
    %v498 = vld [vmem:[#allocation9 + $0x10] sm:$0xf]
    %v499 = vld [vmem:[#allocation9 + $0x14] sm:$0xf]
    %v500 = vld [vmem:[#allocation9 + $0x18] sm:$0xf]
    %v501 = vld [vmem:[#allocation9 + $0x1c] sm:$0xf]
    %v502 = vld [vmem:[#allocation9 + $0x20] sm:$0xf]
    %v503 = vld [vmem:[#allocation9 + $0x24] sm:$0xf]
    %v504 = vld [vmem:[#allocation9 + $0x28] sm:$0xf]
    %v505 = vld [vmem:[#allocation9 + $0x2c] sm:$0xf]
    %v506 = vld [vmem:[#allocation9 + $0x30] sm:$0xf]
    %v507 = vld [vmem:[#allocation9 + $0x34] sm:$0xf]
    %v508 = vld [vmem:[#allocation9 + $0x38] sm:$0xf]
    %v509 = vld [vmem:[#allocation9 + $0x3c] sm:$0xf]
    %v526 = vunpack.c.l.b16 %v494
    %v527 = vunpack.c.l.b16 %v495
    %v528 = vunpack.c.l.b16 %v496
    %v529 = vunpack.c.l.b16 %v497
    %v530 = vunpack.c.l.b16 %v498
    %v531 = vunpack.c.l.b16 %v499
    %v532 = vunpack.c.l.b16 %v500
    %v533 = vunpack.c.l.b16 %v501
    %v534 = vunpack.c.l.b16 %v502
    %v535 = vunpack.c.l.b16 %v503
    %v536 = vunpack.c.l.b16 %v504
    %v537 = vunpack.c.l.b16 %v505
    %v538 = vunpack.c.l.b16 %v506
    %v539 = vunpack.c.l.b16 %v507
    %v540 = vunpack.c.l.b16 %v508
    %v541 = vunpack.c.l.b16 %v509
    %v542 = vpack.c.b16 %v527, %v526
    %v543 = vpack.c.b16 %v529, %v528
    %v544 = vpack.c.b16 %v531, %v530
    %v545 = vpack.c.b16 %v533, %v532
    %v546 = vpack.c.b16 %v535, %v534
    %v547 = vpack.c.b16 %v537, %v536
    %v548 = vpack.c.b16 %v539, %v538
    %v549 = vpack.c.b16 %v541, %v540
    %558 = vmatprep.subr.bf16.mxu0 0
    %559 = vmatpush1.bf16.msra.mxu0 %v542
    %560 = vmatprep.subr.bf16.mxu0 0
    %561 = vmatpush1.bf16.msra.mxu0 %v543
    %562 = vmatprep.subr.bf16.mxu0 0
    %563 = vmatpush1.bf16.msra.mxu0 %v544
    %564 = vmatprep.subr.bf16.mxu0 0
    %565 = vmatpush1.bf16.msra.mxu0 %v545
    %566 = vmatprep.subr.bf16.mxu0 0
    %567 = vmatpush1.bf16.msra.mxu0 %v546
    %568 = vmatprep.subr.bf16.mxu0 0
    %569 = vmatpush1.bf16.msra.mxu0 %v547
    %570 = vmatprep.subr.bf16.mxu0 0
    %571 = vmatpush1.bf16.msra.mxu0 %v548
    %572 = vmatprep.subr.bf16.mxu0 0
    %573 = vmatpush1.bf16.msra.mxu0 %v549
    %574 = vmatprep.subr.bf16.mxu0 0
    %575 = vmatpush1.bf16.msra.mxu0 0
    %576 = vmatprep.subr.bf16.mxu0 0
    %577 = vmatpush1.bf16.msra.mxu0 0
    %578 = vmatprep.subr.bf16.mxu0 0
    %579 = vmatpush1.bf16.msra.mxu0 0
    %580 = vmatprep.subr.bf16.mxu0 0
    %581 = vmatpush1.bf16.msra.mxu0 0
    %582 = vmatprep.subr.bf16.mxu0 0
    %583 = vmatpush1.bf16.msra.mxu0 0
    %584 = vmatprep.subr.bf16.mxu0 0
    %585 = vmatpush1.bf16.msra.mxu0 0
    %586 = vmatprep.subr.bf16.mxu0 0
    %587 = vmatpush1.bf16.msra.mxu0 0
    %588 = vmatprep.subr.bf16.mxu0 0
    %589 = vmatpush1.bf16.msra.mxu0 0
    %590 = vmatprep.mubr.bf16.mxu0 0
    %591 = vmatmul.mubr.bf16.gmra.mrb[0].mxu0 %v493
    %v592 = vpop.f32.mrb[0].mxu0
    %v593 = vadd.f32 %v236, %v592
    %v594 = vpop.f32.mrb[0].mxu0
    %v595 = vpop.f32.mrb[0].mxu0
    %v596 = vpop.f32.mrb[0].mxu0
    %597 = vdwg.mxu0
    %v598 = vmax.f32 %v593, 0.0
    %v599 = vld [vmem:[%s6] sm:$0x1]
    %v601 = vlaneseq
    %v602 = vshrl.u32 %v601, 7
    %v603 = vsub.s32 0, %v602
    %v604 = vrot.slane %v599, %v603
    %v606 = vmul.f32 %v598, %v604
    %607 = vadd.xlane.f32.xlu0 %v606
    %v608 = vpop.xlane.xlu0 %607
    %v609 = vadd.f32 %v608, %v275
    %v610 = vsub.f32 0.0, %v609
    %v611 = vmul.f32 %v610, 1.442695
    %v612 = vpow.pop %v611
    %v613 = vadd.f32 %v612, 1.0
    %v614 = vrcp.pop %v613
    %v615 = vmul.f32 1.0, %v614
    %vm616 = vcmask 7168
    %617 = vst.msk [vmem:[%s7] sm:$0xff] %vm616, %v615
    // Predicated region
    $region50: #{tpu_custom_call.1} parent=1 // pred_check
      _
    $region51: #{tpu_custom_call.1} parent=1 // pred_check_branch
      %619 = sbr.rel (0) target = $region53
    $region52: #{tpu_custom_call.1} parent=1 // pred_region
      _
    $region53: #{tpu_custom_call.1} parent=1 // pred_fallthru
      _
    // Predicated region
    $region54: #{tpu_custom_call.1} parent=1 // pred_check
      _
    $region55: #{tpu_custom_call.1} parent=1 // pred_check_branch
      %621 = sbr.rel (0) target = $region57
    $region56: #{tpu_custom_call.1} parent=1 // pred_region
      _
    $region57: #{tpu_custom_call.1} parent=1 // pred_fallthru
      _
    %622 = vsyncpa [#allocation3], 1
    %623 = vsyncpa [#allocation5], 1
    %624 = vsyncpa [#allocation8], 1

// kernel: tpu_custom_call.1
$region0: #{tpu_custom_call.1}
  #allocation0 [shape = 'u32[]', space=smem, size = 0x4, offset = 0x4, fixed_abs, tag = 'smem constant byte address 0x4 - core index']
  #allocation1 [shape = 'u32[144,128]{1,0:T(1,128)}', space=vmem, size = 0x12000, scoped, tag = 'internal scratch']
  %s0 = inlined_call_operand.hbm [shape: f32[8,16], index: 0, kind: input, shape index: {}]
  %s1 = inlined_call_operand.hbm [shape: bf16[16,640], index: 1, kind: input, shape index: {}]
  %s2 = inlined_call_operand.vmem [shape: f32[1,640], index: 2, kind: input, shape index: {}]
  %s3 = inlined_call_operand.hbm [shape: bf16[128,128], index: 3, kind: input, shape index: {}]
  %s4 = inlined_call_operand.hbm [shape: bf16[128,128], index: 4, kind: input, shape index: {}]
  %s5 = inlined_call_operand.hbm [shape: bf16[128,128], index: 5, kind: input, shape index: {}]
  %s6 = inlined_call_operand.vmem [shape: f32[1,128], index: 6, kind: input, shape index: {}]
  %s7 = inlined_call_operand.vmem [shape: f32[8,1], index: 7, kind: output, shape index: {}]
  %s8 = sld [smem:[#allocation0]]
  $region58: #{tpu_custom_call.1} parent=0
    _
  %s10 = ssub.s32 1, %s8
  %s11 = scalar_select 0, %s10, %s8
  $region1: #{tpu_custom_call.1} parent=0
    #allocation2 [shape = 'u8[4096]{0}', space=vmem, size = 0x1000, scoped, tag = 'input window, operand 0, single buffered']
    #allocation3 [shape = 's32[1]{0}', space=sflag, size = 0x4, scoped, tag = 'scoped memory for tpu_custom_call.1']
    #allocation4 [shape = 'u8[20480]{0}', space=vmem, size = 0x5000, scoped, tag = 'input window, operand 1, single buffered']
    #allocation5 [shape = 's32[1]{0}', space=sflag, size = 0x4, scoped, tag = 'scoped memory for tpu_custom_call.1']
    #allocation6 [shape = 'u8[32768]{0}', space=vmem, size = 0x8000, scoped, tag = 'input window, operand 3, single buffered']
    #allocation7 [shape = 'u8[32768]{0}', space=vmem, size = 0x8000, scoped, tag = 'input window, operand 4, single buffered']
    #allocation8 [shape = 's32[1]{0}', space=sflag, size = 0x4, scoped, tag = 'scoped memory for tpu_custom_call.1']
    #allocation9 [shape = 'u8[32768]{0}', space=vmem, size = 0x8000, scoped, tag = 'input window, operand 5, single buffered']
    %12 = vsyncpa [#allocation3], 0
    %13 = vsyncpa [#allocation5], 0
    %14 = vsyncpa [#allocation8], 0
    // Predicated region
    $region2: #{tpu_custom_call.1} parent=1 // pred_check
      _
    $region3: #{tpu_custom_call.1} parent=1 // pred_check_branch
      %16 = sbr.rel (0) target = $region5
    $region4: #{tpu_custom_call.1} parent=1 // pred_region
      %s18 = ssub.s32 128, 128
      %19 = vsyncadd [#allocation3], %s18
      %s21 = sshll.u32 [#allocation2], 4
      %s22 = int_to_ptr.vmem [resolvable:$true] %s21
      %24 = dma.hbm_to_vmem [thread:$0]  %s0, 128, %s22, [#allocation3]
    $region5: #{tpu_custom_call.1} parent=1 // pred_fallthru
      _
    // Predicated region
    $region6: #{tpu_custom_call.1} parent=1 // pred_check
      _
    $region7: #{tpu_custom_call.1} parent=1 // pred_check_branch
      %26 = sbr.rel (0) target = $region9
    $region8: #{tpu_custom_call.1} parent=1 // pred_region
      %s28 = ssub.s32 640, 640
      %29 = vsyncadd [#allocation5], %s28
      %s30 = sshll.u32 [#allocation4], 4
      %s31 = int_to_ptr.vmem [resolvable:$true] %s30
      %36 = dma.hbm_to_vmem [thread:$0]  %s1, 640, %s31, [#allocation5], 320, 320, 20
    $region9: #{tpu_custom_call.1} parent=1 // pred_fallthru
      _
    // Predicated region
    $region10: #{tpu_custom_call.1} parent=1 // pred_check
      _
    $region11: #{tpu_custom_call.1} parent=1 // pred_check_branch
      %38 = sbr.rel (0) target = $region13
    $region12: #{tpu_custom_call.1} parent=1 // pred_region
      _
    $region13: #{tpu_custom_call.1} parent=1 // pred_fallthru
      _
    // Predicated region
    $region14: #{tpu_custom_call.1} parent=1 // pred_check
      _
    $region15: #{tpu_custom_call.1} parent=1 // pred_check_branch
      %40 = sbr.rel (0) target = $region17
    $region16: #{tpu_custom_call.1} parent=1 // pred_region
      %s42 = ssub.s32 1024, 1024
      %43 = vsyncadd [#allocation5], %s42
      %s44 = sshll.u32 [#allocation6], 4
      %s45 = int_to_ptr.vmem [resolvable:$true] %s44
      %50 = dma.hbm_to_vmem [thread:$0]  %s3, 1024, %s45, [#allocation5], 64, 64, 4
    $region17: #{tpu_custom_call.1} parent=1 // pred_fallthru
      _
    // Predicated region
    $region18: #{tpu_custom_call.1} parent=1 // pred_check
      _
    $region19: #{tpu_custom_call.1} parent=1 // pred_check_branch
      %52 = sbr.rel (0) target = $region21
    $region20: #{tpu_custom_call.1} parent=1 // pred_region
      %s54 = ssub.s32 1024, 1024
      %55 = vsyncadd [#allocation8], %s54
      %s56 = sshll.u32 [#allocation7], 4
      %s57 = int_to_ptr.vmem [resolvable:$true] %s56
      %62 = dma.hbm_to_vmem [thread:$0]  %s4, 1024, %s57, [#allocation8], 64, 64, 4
    $region21: #{tpu_custom_call.1} parent=1 // pred_fallthru
      _
    // Predicated region
    $region22: #{tpu_custom_call.1} parent=1 // pred_check
      _
    $region23: #{tpu_custom_call.1} parent=1 // pred_check_branch
      %64 = sbr.rel (0) target = $region25
    $region24: #{tpu_custom_call.1} parent=1 // pred_region
      %s66 = ssub.s32 1024, 1024
      %67 = vsyncadd [#allocation8], %s66
      %s68 = sshll.u32 [#allocation9], 4
      %s69 = int_to_ptr.vmem [resolvable:$true] %s68
      %74 = dma.hbm_to_vmem [thread:$0]  %s5, 1024, %s69, [#allocation8], 64, 64, 4
    $region25: #{tpu_custom_call.1} parent=1 // pred_fallthru
      _
    // Predicated region
    $region26: #{tpu_custom_call.1} parent=1 // pred_check
      _
    $region27: #{tpu_custom_call.1} parent=1 // pred_check_branch
      %76 = sbr.rel (0) target = $region29
    $region28: #{tpu_custom_call.1} parent=1 // pred_region
      _
    $region29: #{tpu_custom_call.1} parent=1 // pred_fallthru
      _
    // Predicated region
    $region30: #{tpu_custom_call.1} parent=1 // pred_check
      _
    $region31: #{tpu_custom_call.1} parent=1 // pred_check_branch
      %78 = sbr.rel (0) target = $region33
    $region32: #{tpu_custom_call.1} parent=1 // pred_region
      %79 = dma.done [#allocation3], 128
    $region33: #{tpu_custom_call.1} parent=1 // pred_fallthru
      _
    // Predicated region
    $region34: #{tpu_custom_call.1} parent=1 // pred_check
      _
    $region35: #{tpu_custom_call.1} parent=1 // pred_check_branch
      %81 = sbr.rel (0) target = $region37
    $region36: #{tpu_custom_call.1} parent=1 // pred_region
      %82 = dma.done [#allocation5], 640
    $region37: #{tpu_custom_call.1} parent=1 // pred_fallthru
      _
    // Predicated region
    $region38: #{tpu_custom_call.1} parent=1 // pred_check
      _
    $region39: #{tpu_custom_call.1} parent=1 // pred_check_branch
      %84 = sbr.rel (0) target = $region41
    $region40: #{tpu_custom_call.1} parent=1 // pred_region
      %85 = dma.done [#allocation5], 1024
    $region41: #{tpu_custom_call.1} parent=1 // pred_fallthru
      _
    // Predicated region
    $region42: #{tpu_custom_call.1} parent=1 // pred_check
      _
    $region43: #{tpu_custom_call.1} parent=1 // pred_check_branch
      %87 = sbr.rel (0) target = $region45
    $region44: #{tpu_custom_call.1} parent=1 // pred_region
      %88 = dma.done [#allocation8], 1024
    $region45: #{tpu_custom_call.1} parent=1 // pred_fallthru
      _
    // Predicated region
    $region46: #{tpu_custom_call.1} parent=1 // pred_check
      _
    $region47: #{tpu_custom_call.1} parent=1 // pred_check_branch
      %90 = sbr.rel (0) target = $region49
    $region48: #{tpu_custom_call.1} parent=1 // pred_region
      %91 = dma.done [#allocation8], 1024
    $region49: #{tpu_custom_call.1} parent=1 // pred_fallthru
      _
    %v93 = vld [vmem:[#allocation2] sm:$0xff]
    %v94 = vpack.c.bf16 %v93, %v93
    %v95 = vld [vmem:[#allocation4] sm:$0xff]
    %v96 = vld [vmem:[#allocation4 + $0x8] sm:$0xff]
    %v97 = vld [vmem:[#allocation4 + $0x10] sm:$0xf]
    %v98 = vld [vmem:[#allocation4 + $0x14] sm:$0xff]
    %v99 = vld [vmem:[#allocation4 + $0x1c] sm:$0xff]
    %v100 = vld [vmem:[#allocation4 + $0x24] sm:$0xf]
    %v101 = vld [vmem:[%s2] sm:$0x1f]
    %v103 = vlaneseq
    %v104 = vshrl.u32 %v103, 7
    %v105 = vsub.s32 0, %v104
    %v106 = vrot.slane %v101, %v105
    %v107 = vlaneseq
    %v108 = vshrl.u32 %v107, 7
    %v109 = vsub.s32 1, %v108
    %v110 = vrot.slane %v101, %v109
    %v111 = vlaneseq
    %v112 = vshrl.u32 %v111, 7
    %v113 = vsub.s32 2, %v112
    %v114 = vrot.slane %v101, %v113
    %v115 = vlaneseq
    %v116 = vshrl.u32 %v115, 7
    %v117 = vsub.s32 3, %v116
    %v118 = vrot.slane %v101, %v117
    %v119 = vlaneseq
    %v120 = vshrl.u32 %v119, 7
    %v121 = vsub.s32 4, %v120
    %v122 = vrot.slane %v101, %v121
    %v134 = vunpack.c.l.b16 %v95
    %v135 = vunpack.c.h.b16 %v95
    %v136 = vunpack.c.l.b16 %v96
    %v137 = vunpack.c.h.b16 %v96
    %v138 = vunpack.c.l.b16 %v97
    %v139 = vunpack.c.l.b16 %v98
    %v140 = vunpack.c.h.b16 %v98
    %v141 = vunpack.c.l.b16 %v99
    %v142 = vunpack.c.h.b16 %v99
    %v143 = vunpack.c.l.b16 %v100
    %v144 = vpack.c.b16 %v139, %v134
    %v145 = vpack.c.b16 %v140, %v135
    %v146 = vpack.c.b16 %v141, %v136
    %v147 = vpack.c.b16 %v142, %v137
    %v148 = vpack.c.b16 %v143, %v138
    %vm154 = vcmask 130048
    %v156 = vsel %vm154, %v94, 0
    %158 = vmatprep.subr.bf16.mxu0 %v145
    %159 = vmatpush1.bf16.msra.mxu0 %v144
    %160 = vmatprep.subr.bf16.mxu0 0
    %161 = vmatpush1.bf16.msra.mxu0 0
    %162 = vmatprep.subr.bf16.mxu0 0
    %163 = vmatpush1.bf16.msra.mxu0 0
    %164 = vmatprep.subr.bf16.mxu0 0
    %165 = vmatpush1.bf16.msra.mxu0 0
    %166 = vmatprep.subr.bf16.mxu0 0
    %167 = vmatpush1.bf16.msra.mxu0 0
    %168 = vmatprep.subr.bf16.mxu0 0
    %169 = vmatpush1.bf16.msra.mxu0 0
    %170 = vmatprep.subr.bf16.mxu0 0
    %171 = vmatpush1.bf16.msra.mxu0 0
    %172 = vmatprep.subr.bf16.mxu0 0
    %173 = vmatpush1.bf16.msra.mxu0 0
    %174 = vmatprep.subr.bf16.mxu0 0
    %175 = vmatpush1.bf16.msra.mxu0 0
    %176 = vmatprep.subr.bf16.mxu0 0
    %177 = vmatpush1.bf16.msra.mxu0 0
    %178 = vmatprep.subr.bf16.mxu0 0
    %179 = vmatpush1.bf16.msra.mxu0 0
    %180 = vmatprep.subr.bf16.mxu0 0
    %181 = vmatpush1.bf16.msra.mxu0 0
    %182 = vmatprep.subr.bf16.mxu0 0
    %183 = vmatpush1.bf16.msra.mxu0 0
    %184 = vmatprep.subr.bf16.mxu0 0
    %185 = vmatpush1.bf16.msra.mxu0 0
    %186 = vmatprep.subr.bf16.mxu0 0
    %187 = vmatpush1.bf16.msra.mxu0 0
    %188 = vmatprep.subr.bf16.mxu0 0
    %189 = vmatpush1.bf16.msra.mxu0 0
    %190 = vmatprep.mubr.bf16.mxu0 0
    %191 = vmatmul.mubr.bf16.gmra.mrb[0].mxu0 %v156
    %v192 = vpop.f32.mrb[0].mxu0
    %v193 = vadd.f32 %v106, %v192
    %v194 = vpop.f32.mrb[0].mxu0
    %v195 = vadd.f32 %v110, %v194
    %v196 = vpop.f32.mrb[0].mxu0
    %v197 = vpop.f32.mrb[0].mxu0
    %198 = vdwg.mxu0
    %199 = vmatprep.subr.bf16.mxu0 %v147
    %200 = vmatpush1.bf16.msra.mxu0 %v146
    %201 = vmatprep.subr.bf16.mxu0 0
    %202 = vmatpush1.bf16.msra.mxu0 0
    %203 = vmatprep.subr.bf16.mxu0 0
    %204 = vmatpush1.bf16.msra.mxu0 0
    %205 = vmatprep.subr.bf16.mxu0 0
    %206 = vmatpush1.bf16.msra.mxu0 0
    %207 = vmatprep.subr.bf16.mxu0 0
    %208 = vmatpush1.bf16.msra.mxu0 0
    %209 = vmatprep.subr.bf16.mxu0 0
    %210 = vmatpush1.bf16.msra.mxu0 0
    %211 = vmatprep.subr.bf16.mxu0 0
    %212 = vmatpush1.bf16.msra.mxu0 0
    %213 = vmatprep.subr.bf16.mxu0 0
    %214 = vmatpush1.bf16.msra.mxu0 0
    %215 = vmatprep.subr.bf16.mxu0 0
    %216 = vmatpush1.bf16.msra.mxu0 0
    %217 = vmatprep.subr.bf16.mxu0 0
    %218 = vmatpush1.bf16.msra.mxu0 0
    %219 = vmatprep.subr.bf16.mxu0 0
    %220 = vmatpush1.bf16.msra.mxu0 0
    %221 = vmatprep.subr.bf16.mxu0 0
    %222 = vmatpush1.bf16.msra.mxu0 0
    %223 = vmatprep.subr.bf16.mxu0 0
    %224 = vmatpush1.bf16.msra.mxu0 0
    %225 = vmatprep.subr.bf16.mxu0 0
    %226 = vmatpush1.bf16.msra.mxu0 0
    %227 = vmatprep.subr.bf16.mxu0 0
    %228 = vmatpush1.bf16.msra.mxu0 0
    %229 = vmatprep.subr.bf16.mxu0 0
    %230 = vmatpush1.bf16.msra.mxu0 0
    %231 = vmatprep.mubr.bf16.mxu0 0
    %232 = vmatmul.mubr.bf16.gmra.mrb[0].mxu0 %v156
    %v233 = vpop.f32.mrb[0].mxu0
    %v234 = vadd.f32 %v114, %v233
    %v235 = vpop.f32.mrb[0].mxu0
    %v236 = vadd.f32 %v118, %v235
    %v237 = vpop.f32.mrb[0].mxu0
    %v238 = vpop.f32.mrb[0].mxu0
    %239 = vdwg.mxu0
    %240 = vmatprep.subr.bf16.mxu0 0
    %241 = vmatpush1.bf16.msra.mxu0 %v148
    %242 = vmatprep.subr.bf16.mxu0 0
    %243 = vmatpush1.bf16.msra.mxu0 0
    %244 = vmatprep.subr.bf16.mxu0 0
    %245 = vmatpush1.bf16.msra.mxu0 0
    %246 = vmatprep.subr.bf16.mxu0 0
    %247 = vmatpush1.bf16.msra.mxu0 0
    %248 = vmatprep.subr.bf16.mxu0 0
    %249 = vmatpush1.bf16.msra.mxu0 0
    %250 = vmatprep.subr.bf16.mxu0 0
    %251 = vmatpush1.bf16.msra.mxu0 0
    %252 = vmatprep.subr.bf16.mxu0 0
    %253 = vmatpush1.bf16.msra.mxu0 0
    %254 = vmatprep.subr.bf16.mxu0 0
    %255 = vmatpush1.bf16.msra.mxu0 0
    %256 = vmatprep.subr.bf16.mxu0 0
    %257 = vmatpush1.bf16.msra.mxu0 0
    %258 = vmatprep.subr.bf16.mxu0 0
    %259 = vmatpush1.bf16.msra.mxu0 0
    %260 = vmatprep.subr.bf16.mxu0 0
    %261 = vmatpush1.bf16.msra.mxu0 0
    %262 = vmatprep.subr.bf16.mxu0 0
    %263 = vmatpush1.bf16.msra.mxu0 0
    %264 = vmatprep.subr.bf16.mxu0 0
    %265 = vmatpush1.bf16.msra.mxu0 0
    %266 = vmatprep.subr.bf16.mxu0 0
    %267 = vmatpush1.bf16.msra.mxu0 0
    %268 = vmatprep.subr.bf16.mxu0 0
    %269 = vmatpush1.bf16.msra.mxu0 0
    %270 = vmatprep.subr.bf16.mxu0 0
    %271 = vmatpush1.bf16.msra.mxu0 0
    %272 = vmatprep.mubr.bf16.mxu0 0
    %273 = vmatmul.mubr.bf16.gmra.mrb[0].mxu0 %v156
    %v274 = vpop.f32.mrb[0].mxu0
    %v275 = vadd.f32 %v122, %v274
    %v276 = vpop.f32.mrb[0].mxu0
    %v277 = vpop.f32.mrb[0].mxu0
    %v278 = vpop.f32.mrb[0].mxu0
    %279 = vdwg.mxu0
    %v280 = vmax.f32 %v193, 0.0
    %v281 = vpack.c.bf16 %v280, %v280
    %v282 = vld [vmem:[#allocation6] sm:$0xf]
    %v283 = vld [vmem:[#allocation6 + $0x4] sm:$0xf]
    %v284 = vld [vmem:[#allocation6 + $0x8] sm:$0xf]
    %v285 = vld [vmem:[#allocation6 + $0xc] sm:$0xf]
    %v286 = vld [vmem:[#allocation6 + $0x10] sm:$0xf]
    %v287 = vld [vmem:[#allocation6 + $0x14] sm:$0xf]
    %v288 = vld [vmem:[#allocation6 + $0x18] sm:$0xf]
    %v289 = vld [vmem:[#allocation6 + $0x1c] sm:$0xf]
    %v290 = vld [vmem:[#allocation6 + $0x20] sm:$0xf]
    %v291 = vld [vmem:[#allocation6 + $0x24] sm:$0xf]
    %v292 = vld [vmem:[#allocation6 + $0x28] sm:$0xf]
    %v293 = vld [vmem:[#allocation6 + $0x2c] sm:$0xf]
    %v294 = vld [vmem:[#allocation6 + $0x30] sm:$0xf]
    %v295 = vld [vmem:[#allocation6 + $0x34] sm:$0xf]
    %v296 = vld [vmem:[#allocation6 + $0x38] sm:$0xf]
    %v297 = vld [vmem:[#allocation6 + $0x3c] sm:$0xf]
    %v314 = vunpack.c.l.b16 %v282
    %v315 = vunpack.c.l.b16 %v283
    %v316 = vunpack.c.l.b16 %v284
    %v317 = vunpack.c.l.b16 %v285
    %v318 = vunpack.c.l.b16 %v286
    %v319 = vunpack.c.l.b16 %v287
    %v320 = vunpack.c.l.b16 %v288
    %v321 = vunpack.c.l.b16 %v289
    %v322 = vunpack.c.l.b16 %v290
    %v323 = vunpack.c.l.b16 %v291
    %v324 = vunpack.c.l.b16 %v292
    %v325 = vunpack.c.l.b16 %v293
    %v326 = vunpack.c.l.b16 %v294
    %v327 = vunpack.c.l.b16 %v295
    %v328 = vunpack.c.l.b16 %v296
    %v329 = vunpack.c.l.b16 %v297
    %v330 = vpack.c.b16 %v315, %v314
    %v331 = vpack.c.b16 %v317, %v316
    %v332 = vpack.c.b16 %v319, %v318
    %v333 = vpack.c.b16 %v321, %v320
    %v334 = vpack.c.b16 %v323, %v322
    %v335 = vpack.c.b16 %v325, %v324
    %v336 = vpack.c.b16 %v327, %v326
    %v337 = vpack.c.b16 %v329, %v328
    %346 = vmatprep.subr.bf16.mxu0 0
    %347 = vmatpush1.bf16.msra.mxu0 %v330
    %348 = vmatprep.subr.bf16.mxu0 0
    %349 = vmatpush1.bf16.msra.mxu0 %v331
    %350 = vmatprep.subr.bf16.mxu0 0
    %351 = vmatpush1.bf16.msra.mxu0 %v332
    %352 = vmatprep.subr.bf16.mxu0 0
    %353 = vmatpush1.bf16.msra.mxu0 %v333
    %354 = vmatprep.subr.bf16.mxu0 0
    %355 = vmatpush1.bf16.msra.mxu0 %v334
    %356 = vmatprep.subr.bf16.mxu0 0
    %357 = vmatpush1.bf16.msra.mxu0 %v335
    %358 = vmatprep.subr.bf16.mxu0 0
    %359 = vmatpush1.bf16.msra.mxu0 %v336
    %360 = vmatprep.subr.bf16.mxu0 0
    %361 = vmatpush1.bf16.msra.mxu0 %v337
    %362 = vmatprep.subr.bf16.mxu0 0
    %363 = vmatpush1.bf16.msra.mxu0 0
    %364 = vmatprep.subr.bf16.mxu0 0
    %365 = vmatpush1.bf16.msra.mxu0 0
    %366 = vmatprep.subr.bf16.mxu0 0
    %367 = vmatpush1.bf16.msra.mxu0 0
    %368 = vmatprep.subr.bf16.mxu0 0
    %369 = vmatpush1.bf16.msra.mxu0 0
    %370 = vmatprep.subr.bf16.mxu0 0
    %371 = vmatpush1.bf16.msra.mxu0 0
    %372 = vmatprep.subr.bf16.mxu0 0
    %373 = vmatpush1.bf16.msra.mxu0 0
    %374 = vmatprep.subr.bf16.mxu0 0
    %375 = vmatpush1.bf16.msra.mxu0 0
    %376 = vmatprep.subr.bf16.mxu0 0
    %377 = vmatpush1.bf16.msra.mxu0 0
    %378 = vmatprep.mubr.bf16.mxu0 0
    %379 = vmatmul.mubr.bf16.gmra.mrb[0].mxu0 %v281
    %v380 = vpop.f32.mrb[0].mxu0
    %v381 = vadd.f32 %v195, %v380
    %v382 = vpop.f32.mrb[0].mxu0
    %v383 = vpop.f32.mrb[0].mxu0
    %v384 = vpop.f32.mrb[0].mxu0
    %385 = vdwg.mxu0
    %v386 = vmax.f32 %v381, 0.0
    %v387 = vpack.c.bf16 %v386, %v386
    %v388 = vld [vmem:[#allocation7] sm:$0xf]
    %v389 = vld [vmem:[#allocation7 + $0x4] sm:$0xf]
    %v390 = vld [vmem:[#allocation7 + $0x8] sm:$0xf]
    %v391 = vld [vmem:[#allocation7 + $0xc] sm:$0xf]
    %v392 = vld [vmem:[#allocation7 + $0x10] sm:$0xf]
    %v393 = vld [vmem:[#allocation7 + $0x14] sm:$0xf]
    %v394 = vld [vmem:[#allocation7 + $0x18] sm:$0xf]
    %v395 = vld [vmem:[#allocation7 + $0x1c] sm:$0xf]
    %v396 = vld [vmem:[#allocation7 + $0x20] sm:$0xf]
    %v397 = vld [vmem:[#allocation7 + $0x24] sm:$0xf]
    %v398 = vld [vmem:[#allocation7 + $0x28] sm:$0xf]
    %v399 = vld [vmem:[#allocation7 + $0x2c] sm:$0xf]
    %v400 = vld [vmem:[#allocation7 + $0x30] sm:$0xf]
    %v401 = vld [vmem:[#allocation7 + $0x34] sm:$0xf]
    %v402 = vld [vmem:[#allocation7 + $0x38] sm:$0xf]
    %v403 = vld [vmem:[#allocation7 + $0x3c] sm:$0xf]
    %v420 = vunpack.c.l.b16 %v388
    %v421 = vunpack.c.l.b16 %v389
    %v422 = vunpack.c.l.b16 %v390
    %v423 = vunpack.c.l.b16 %v391
    %v424 = vunpack.c.l.b16 %v392
    %v425 = vunpack.c.l.b16 %v393
    %v426 = vunpack.c.l.b16 %v394
    %v427 = vunpack.c.l.b16 %v395
    %v428 = vunpack.c.l.b16 %v396
    %v429 = vunpack.c.l.b16 %v397
    %v430 = vunpack.c.l.b16 %v398
    %v431 = vunpack.c.l.b16 %v399
    %v432 = vunpack.c.l.b16 %v400
    %v433 = vunpack.c.l.b16 %v401
    %v434 = vunpack.c.l.b16 %v402
    %v435 = vunpack.c.l.b16 %v403
    %v436 = vpack.c.b16 %v421, %v420
    %v437 = vpack.c.b16 %v423, %v422
    %v438 = vpack.c.b16 %v425, %v424
    %v439 = vpack.c.b16 %v427, %v426
    %v440 = vpack.c.b16 %v429, %v428
    %v441 = vpack.c.b16 %v431, %v430
    %v442 = vpack.c.b16 %v433, %v432
    %v443 = vpack.c.b16 %v435, %v434
    %452 = vmatprep.subr.bf16.mxu0 0
    %453 = vmatpush1.bf16.msra.mxu0 %v436
    %454 = vmatprep.subr.bf16.mxu0 0
    %455 = vmatpush1.bf16.msra.mxu0 %v437
    %456 = vmatprep.subr.bf16.mxu0 0
    %457 = vmatpush1.bf16.msra.mxu0 %v438
    %458 = vmatprep.subr.bf16.mxu0 0
    %459 = vmatpush1.bf16.msra.mxu0 %v439
    %460 = vmatprep.subr.bf16.mxu0 0
    %461 = vmatpush1.bf16.msra.mxu0 %v440
    %462 = vmatprep.subr.bf16.mxu0 0
    %463 = vmatpush1.bf16.msra.mxu0 %v441
    %464 = vmatprep.subr.bf16.mxu0 0
    %465 = vmatpush1.bf16.msra.mxu0 %v442
    %466 = vmatprep.subr.bf16.mxu0 0
    %467 = vmatpush1.bf16.msra.mxu0 %v443
    %468 = vmatprep.subr.bf16.mxu0 0
    %469 = vmatpush1.bf16.msra.mxu0 0
    %470 = vmatprep.subr.bf16.mxu0 0
    %471 = vmatpush1.bf16.msra.mxu0 0
    %472 = vmatprep.subr.bf16.mxu0 0
    %473 = vmatpush1.bf16.msra.mxu0 0
    %474 = vmatprep.subr.bf16.mxu0 0
    %475 = vmatpush1.bf16.msra.mxu0 0
    %476 = vmatprep.subr.bf16.mxu0 0
    %477 = vmatpush1.bf16.msra.mxu0 0
    %478 = vmatprep.subr.bf16.mxu0 0
    %479 = vmatpush1.bf16.msra.mxu0 0
    %480 = vmatprep.subr.bf16.mxu0 0
    %481 = vmatpush1.bf16.msra.mxu0 0
    %482 = vmatprep.subr.bf16.mxu0 0
    %483 = vmatpush1.bf16.msra.mxu0 0
    %484 = vmatprep.mubr.bf16.mxu0 0
    %485 = vmatmul.mubr.bf16.gmra.mrb[0].mxu0 %v387
    %v486 = vpop.f32.mrb[0].mxu0
    %v487 = vadd.f32 %v234, %v486
    %v488 = vpop.f32.mrb[0].mxu0
    %v489 = vpop.f32.mrb[0].mxu0
    %v490 = vpop.f32.mrb[0].mxu0
    %491 = vdwg.mxu0
    %v492 = vmax.f32 %v487, 0.0
    %v493 = vpack.c.bf16 %v492, %v492
    %v494 = vld [vmem:[#allocation9] sm:$0xf]
    %v495 = vld [vmem:[#allocation9 + $0x4] sm:$0xf]
    %v496 = vld [vmem:[#allocation9 + $0x8] sm:$0xf]
    %v497 = vld [vmem:[#allocation9 + $0xc] sm:$0xf]
    %v498 = vld [vmem:[#allocation9 + $0x10] sm:$0xf]
    %v499 = vld [vmem:[#allocation9 + $0x14] sm:$0xf]
    %v500 = vld [vmem:[#allocation9 + $0x18] sm:$0xf]
    %v501 = vld [vmem:[#allocation9 + $0x1c] sm:$0xf]
    %v502 = vld [vmem:[#allocation9 + $0x20] sm:$0xf]
    %v503 = vld [vmem:[#allocation9 + $0x24] sm:$0xf]
    %v504 = vld [vmem:[#allocation9 + $0x28] sm:$0xf]
    %v505 = vld [vmem:[#allocation9 + $0x2c] sm:$0xf]
    %v506 = vld [vmem:[#allocation9 + $0x30] sm:$0xf]
    %v507 = vld [vmem:[#allocation9 + $0x34] sm:$0xf]
    %v508 = vld [vmem:[#allocation9 + $0x38] sm:$0xf]
    %v509 = vld [vmem:[#allocation9 + $0x3c] sm:$0xf]
    %v526 = vunpack.c.l.b16 %v494
    %v527 = vunpack.c.l.b16 %v495
    %v528 = vunpack.c.l.b16 %v496
    %v529 = vunpack.c.l.b16 %v497
    %v530 = vunpack.c.l.b16 %v498
    %v531 = vunpack.c.l.b16 %v499
    %v532 = vunpack.c.l.b16 %v500
    %v533 = vunpack.c.l.b16 %v501
    %v534 = vunpack.c.l.b16 %v502
    %v535 = vunpack.c.l.b16 %v503
    %v536 = vunpack.c.l.b16 %v504
    %v537 = vunpack.c.l.b16 %v505
    %v538 = vunpack.c.l.b16 %v506
    %v539 = vunpack.c.l.b16 %v507
    %v540 = vunpack.c.l.b16 %v508
    %v541 = vunpack.c.l.b16 %v509
    %v542 = vpack.c.b16 %v527, %v526
    %v543 = vpack.c.b16 %v529, %v528
    %v544 = vpack.c.b16 %v531, %v530
    %v545 = vpack.c.b16 %v533, %v532
    %v546 = vpack.c.b16 %v535, %v534
    %v547 = vpack.c.b16 %v537, %v536
    %v548 = vpack.c.b16 %v539, %v538
    %v549 = vpack.c.b16 %v541, %v540
    %558 = vmatprep.subr.bf16.mxu0 0
    %559 = vmatpush1.bf16.msra.mxu0 %v542
    %560 = vmatprep.subr.bf16.mxu0 0
    %561 = vmatpush1.bf16.msra.mxu0 %v543
    %562 = vmatprep.subr.bf16.mxu0 0
    %563 = vmatpush1.bf16.msra.mxu0 %v544
    %564 = vmatprep.subr.bf16.mxu0 0
    %565 = vmatpush1.bf16.msra.mxu0 %v545
    %566 = vmatprep.subr.bf16.mxu0 0
    %567 = vmatpush1.bf16.msra.mxu0 %v546
    %568 = vmatprep.subr.bf16.mxu0 0
    %569 = vmatpush1.bf16.msra.mxu0 %v547
    %570 = vmatprep.subr.bf16.mxu0 0
    %571 = vmatpush1.bf16.msra.mxu0 %v548
    %572 = vmatprep.subr.bf16.mxu0 0
    %573 = vmatpush1.bf16.msra.mxu0 %v549
    %574 = vmatprep.subr.bf16.mxu0 0
    %575 = vmatpush1.bf16.msra.mxu0 0
    %576 = vmatprep.subr.bf16.mxu0 0
    %577 = vmatpush1.bf16.msra.mxu0 0
    %578 = vmatprep.subr.bf16.mxu0 0
    %579 = vmatpush1.bf16.msra.mxu0 0
    %580 = vmatprep.subr.bf16.mxu0 0
    %581 = vmatpush1.bf16.msra.mxu0 0
    %582 = vmatprep.subr.bf16.mxu0 0
    %583 = vmatpush1.bf16.msra.mxu0 0
    %584 = vmatprep.subr.bf16.mxu0 0
    %585 = vmatpush1.bf16.msra.mxu0 0
    %586 = vmatprep.subr.bf16.mxu0 0
    %587 = vmatpush1.bf16.msra.mxu0 0
    %588 = vmatprep.subr.bf16.mxu0 0
    %589 = vmatpush1.bf16.msra.mxu0 0
    %590 = vmatprep.mubr.bf16.mxu0 0
    %591 = vmatmul.mubr.bf16.gmra.mrb[0].mxu0 %v493
    %v592 = vpop.f32.mrb[0].mxu0
    %v593 = vadd.f32 %v236, %v592
    %v594 = vpop.f32.mrb[0].mxu0
    %v595 = vpop.f32.mrb[0].mxu0
    %v596 = vpop.f32.mrb[0].mxu0
    %597 = vdwg.mxu0
    %v598 = vmax.f32 %v593, 0.0
    %v599 = vld [vmem:[%s6] sm:$0x1]
    %v601 = vlaneseq
    %v602 = vshrl.u32 %v601, 7
    %v603 = vsub.s32 0, %v602
    %v604 = vrot.slane %v599, %v603
    %v606 = vmul.f32 %v598, %v604
    %607 = vadd.xlane.f32.xlu0 %v606
    %v608 = vpop.xlane.xlu0 %607
    %v609 = vadd.f32 %v608, %v275
    %v610 = vsub.f32 0.0, %v609
    %v611 = vmul.f32 %v610, 1.442695
    %v612 = vpow.pop %v611
    %v613 = vadd.f32 %v612, 1.0
    %v614 = vrcp.pop %v613
    %v615 = vmul.f32 1.0, %v614
    %vm616 = vcmask 7168
    %617 = vst.msk [vmem:[%s7] sm:$0xff] %vm616, %v615
    // Predicated region
    $region50: #{tpu_custom_call.1} parent=1 // pred_check
      _
    $region51: #{tpu_custom_call.1} parent=1 // pred_check_branch
      %619 = sbr.rel (0) target = $region53
    $region52: #{tpu_custom_call.1} parent=1 // pred_region
      _
    $region53: #{tpu_custom_call.1} parent=1 // pred_fallthru
      _
    // Predicated region
    $region54: #{tpu_custom_call.1} parent=1 // pred_check
      _
    $region55: #{tpu_custom_call.1} parent=1 // pred_check_branch
      %621 = sbr.rel (0) target = $region57
    $region56: #{tpu_custom_call.1} parent=1 // pred_region
      _
    $region57: #{tpu_custom_call.1} parent=1 // pred_fallthru
      _
    %622 = vsyncpa [#allocation3], 1
    %623 = vsyncpa [#allocation5], 1
    %624 = vsyncpa [#allocation8], 1

</llo_original>
